<compile_context>
chip_gen: v7x
topology: tpu7x:2x2x1
jax: 0.10.0
libtpu: 0.0.40
codegen_flags: <defaults>
</compile_context>

<pallas_src>
import functools

import jax
import jax.numpy as jnp
from jax.experimental import pallas as pl
from jax.experimental.pallas import tpu as pltpu


def _round_up(x, m):
    return ((x + m - 1) // m) * m


# Explicit scoped-VMEM cap: the configs below use ~10-16 MiB, so 32 MiB is safe
# on v5e/v6e (128 MiB physical) and v7x (64 MiB physical).  Could be raised to
# 64-96 MiB on v5e/v6e if larger tiles are ever desired.
_VMEM_LIMIT = 32 * 1024 * 1024

# Fused (A-resident) path threshold: A_hat bf16 <= 8 MiB.
_FUSED_MAX_NPAD = 2048


# ----------------------------------------------------------------------------
# Fused kernel (small graphs): A_hat + activations stay in VMEM for all layers.
#   out = PReLU(A @ ((A @ ((A @ ((A @ hw0 + b1) W2) + b2) W3) + b3) W4) + b4)
# ----------------------------------------------------------------------------
def gcn_fused_kernel(a_ref, hw_ref, b1_ref, b2_ref, b3_ref, b4_ref,
                     w2_ref, w3_ref, w4_ref, alpha_ref, o_ref):
    bf16 = jnp.bfloat16
    hw = hw_ref[...]
    for b_ref, w_ref in ((b1_ref, w2_ref), (b2_ref, w3_ref), (b3_ref, w4_ref)):
        h = jnp.dot(a_ref[...], hw, preferred_element_type=jnp.float32) + b_ref[...]
        hw = jnp.dot(h.astype(bf16), w_ref[...],
                     preferred_element_type=jnp.float32).astype(bf16)
    h = jnp.dot(a_ref[...], hw, preferred_element_type=jnp.float32) + b4_ref[...]
    o_ref[...] = jnp.where(h >= 0, h, alpha_ref[...] * h).astype(o_ref.dtype)


def _fused_call(a_bf16, hw, b1, b2, b3, b4, w2, w3, w4, alpha, h_pad):
    n_pad = a_bf16.shape[0]
    return pl.pallas_call(
        gcn_fused_kernel,
        out_shape=jax.ShapeDtypeStruct((n_pad, h_pad), jnp.float32),
        compiler_params=pltpu.CompilerParams(vmem_limit_bytes=_VMEM_LIMIT),
    )(a_bf16, hw, b1, b2, b3, b4, w2, w3, w4, alpha)


# ----------------------------------------------------------------------------
# Tiled kernels (large graphs).
#   grid = (N_pad/TM row tiles [parallel], N_pad/TK reduction [arbitrary])
#   a_ref : (TM, TK) bf16 tile, streamed from HBM
#   hw_ref: (N_pad, H) bf16, VMEM-resident (constant block index, fetched once)
#   acc   : (TM, H) f32 scratch, initialized with the broadcast bias at k==0
# Layers 1-3: the next layer's W projection is fused into the last-K finalize.
# Layer 4:    the per-channel PReLU is fused into the last-K finalize.
# ----------------------------------------------------------------------------
def gcn_mid_kernel(a_ref, hw_ref, b_ref, wn_ref, o_ref, acc_ref, *, tk):
    k = pl.program_id(1)

    @pl.when(k == 0)
    def _():
        acc_ref[...] = jnp.broadcast_to(b_ref[...], acc_ref.shape)

    start = pl.multiple_of(k * tk, tk)
    acc_ref[...] += jnp.dot(a_ref[...], hw_ref[pl.ds(start, tk), :],
                            preferred_element_type=jnp.float32)

    @pl.when(k == pl.num_programs(1) - 1)
    def _():
        o_ref[...] = jnp.dot(
            acc_ref[...].astype(jnp.bfloat16), wn_ref[...],
            preferred_element_type=jnp.float32,
        ).astype(o_ref.dtype)


def gcn_last_kernel(a_ref, hw_ref, b_ref, alpha_ref, o_ref, acc_ref, *, tk):
    k = pl.program_id(1)

    @pl.when(k == 0)
    def _():
        acc_ref[...] = jnp.broadcast_to(b_ref[...], acc_ref.shape)

    start = pl.multiple_of(k * tk, tk)
    acc_ref[...] += jnp.dot(a_ref[...], hw_ref[pl.ds(start, tk), :],
                            preferred_element_type=jnp.float32)

    @pl.when(k == pl.num_programs(1) - 1)
    def _():
        h = acc_ref[...]
        o_ref[...] = jnp.where(h >= 0, h, alpha_ref[...] * h).astype(o_ref.dtype)


def _agg_call(kernel, a_bf16, hw, bias, extra, out_dtype, tm, tk, h_pad):
    n_pad = a_bf16.shape[0]
    grid = (n_pad // tm, n_pad // tk)
    return pl.pallas_call(
        functools.partial(kernel, tk=tk),
        out_shape=jax.ShapeDtypeStruct((n_pad, h_pad), out_dtype),
        grid_spec=pltpu.PrefetchScalarGridSpec(
            num_scalar_prefetch=0,
            grid=grid,
            in_specs=[
                # A tile: streamed from HBM (the only per-step DMA stream).
                pl.BlockSpec((tm, tk), lambda i, k: (i, k)),
                # hw: full activation matrix, constant block index -> DMA'd once
                # and kept VMEM-resident; sliced in-kernel with pl.ds.
                pl.BlockSpec((n_pad, h_pad), lambda i, k: (0, 0)),
                # bias: resident.
                pl.BlockSpec((1, h_pad), lambda i, k: (0, 0)),
                # W_next (mid layers) or PReLU alpha (last layer): resident.
                pl.BlockSpec(extra.shape, lambda i, k: (0, 0)),
            ],
            out_specs=pl.BlockSpec((tm, h_pad), lambda i, k: (i, 0)),
            scratch_shapes=[pltpu.VMEM((tm, h_pad), jnp.float32)],
        ),
        compiler_params=pltpu.CompilerParams(
            dimension_semantics=("parallel", "arbitrary"),
            vmem_limit_bytes=_VMEM_LIMIT,
        ),
    )(a_bf16, hw, bias, extra)


def _pick_tiles(n_pad, tm, tk):
    """Tile sizes dividing n_pad; >=2 row tiles when possible (v7x dual-TC)."""
    if tm is None:
        if n_pad >= 2048 and n_pad % 512 == 0:
            tm = 512
        elif n_pad >= 512 and n_pad % 256 == 0:
            tm = 256
        else:
            tm = 128
    if tk is None:
        if n_pad <= 1024:
            tk = n_pad
        else:
            tk = 1024
            while n_pad % tk:
                tk //= 2
    return tm, tk


def encoder_forward(a_hat, x, params, *, tm=None, tk=None, force_tiled=False):
    """Fused 4-layer GCN encoder + PReLU over the dense normalized adjacency."""
    n = x.shape[0]
    hidden = params["w1"].shape[1]

    h_pad = _round_up(hidden, 128)
    n_pad = _round_up(n, 128)        # pad only to 128: no quadratic pad waste

    f32, bf16 = jnp.float32, jnp.bfloat16
    pad_c = (0, h_pad - hidden)
    pad_n = (0, n_pad - n)

    # Pad + cast once in the wrapper so HBM-resident operands are already bf16.
    a_bf16 = jnp.pad(a_hat, (pad_n, pad_n)).astype(bf16)
    x_pad = jnp.pad(x, (pad_n, (0, 0))).astype(f32)

    w1 = jnp.pad(params["w1"], ((0, 0), pad_c)).astype(f32)
    w2 = jnp.pad(params["w2"], (pad_c, pad_c)).astype(bf16)
    w3 = jnp.pad(params["w3"], (pad_c, pad_c)).astype(bf16)
    w4 = jnp.pad(params["w4"], (pad_c, pad_c)).astype(bf16)
    b1 = jnp.pad(params["b1"], ((0, 0), pad_c)).astype(f32)
    b2 = jnp.pad(params["b2"], ((0, 0), pad_c)).astype(f32)
    b3 = jnp.pad(params["b3"], ((0, 0), pad_c)).astype(f32)
    b4 = jnp.pad(params["b4"], ((0, 0), pad_c)).astype(f32)
    alpha = jnp.pad(params["alpha"], ((0, 0), pad_c)).astype(f32)

    # Feature projection X @ W1 in plain XLA (cin << 128 lanes; tiny FLOPs).
    hw = jnp.dot(x_pad, w1, preferred_element_type=f32).astype(bf16)

    if (not force_tiled) and n_pad <= _FUSED_MAX_NPAD:
        # A fits VMEM: one kernel, A read from HBM exactly once for all 4 layers.
        out = _fused_call(a_bf16, hw, b1, b2, b3, b4, w2, w3, w4, alpha, h_pad)
    else:
        tm, tk = _pick_tiles(n_pad, tm, tk)
        hw = _agg_call(gcn_mid_kernel, a_bf16, hw, b1, w2, bf16, tm, tk, h_pad)   # layer 1
        hw = _agg_call(gcn_mid_kernel, a_bf16, hw, b2, w3, bf16, tm, tk, h_pad)   # layer 2
        hw = _agg_call(gcn_mid_kernel, a_bf16, hw, b3, w4, bf16, tm, tk, h_pad)   # layer 3
        out = _agg_call(gcn_last_kernel, a_bf16, hw, b4, alpha, f32, tm, tk, h_pad)  # layer 4 + PReLU

    return out[:n, :hidden]


# ----------------------------------------------------------------------------
# Plain-JAX glue: PyG-style gcn_norm -> dense normalized adjacency
# ----------------------------------------------------------------------------
def gcn_norm_dense(edge_index, edge_weight, num_nodes):
    """Dense A_hat = D^{-1/2} (A + I) D^{-1/2} (PyG gcn_norm, add_self_loops=True)."""
    row, col = edge_index[0], edge_index[1]
    a = jnp.zeros((num_nodes, num_nodes), dtype=jnp.float32)
    a = a.at[col, row].add(edge_weight)          # message source(row) -> target(col)
    idx = jnp.arange(num_nodes)
    a = a.at[idx, idx].add(1.0)                  # self loops, weight 1
    deg = a.sum(axis=1)
    deg_inv_sqrt = jnp.where(deg > 0, 1.0 / jnp.sqrt(deg), 0.0)
    return deg_inv_sqrt[:, None] * a * deg_inv_sqrt[None, :]


def init_params(key, in_channels, hidden_channels):
    """Deterministic parameter init (Glorot for weights, zero bias, 0.25 PReLU)."""
    ks = jax.random.split(key, 4)

    def glorot(k, fan_in, fan_out):
        lim = jnp.sqrt(6.0 / (fan_in + fan_out))
        return jax.random.uniform(k, (fan_in, fan_out), jnp.float32, -lim, lim)

    return {
        "w1": glorot(ks[0], in_channels, hidden_channels),
        "b1": jnp.zeros((1, hidden_channels), jnp.float32),
        "w2": glorot(ks[1], hidden_channels, hidden_channels),
        "b2": jnp.zeros((1, hidden_channels), jnp.float32),
        "w3": glorot(ks[2], hidden_channels, hidden_channels),
        "b3": jnp.zeros((1, hidden_channels), jnp.float32),
        "w4": glorot(ks[3], hidden_channels, hidden_channels),
        "b4": jnp.zeros((1, hidden_channels), jnp.float32),
        "alpha": jnp.full((1, hidden_channels), 0.25, jnp.float32),  # nn.PReLU default
    }


def reference_forward(a_hat, x, p):
    """Plain-JAX reference mirroring the kernel's numerics (bf16 operands, f32 acc)."""
    bf16 = jnp.bfloat16
    a = a_hat.astype(bf16)
    hw = jnp.dot(x, p["w1"], preferred_element_type=jnp.float32).astype(bf16)
    mid = ((p["w2"], p["b1"]), (p["w3"], p["b2"]), (p["w4"], p["b3"]))
    for w, b in mid:
        h = jnp.dot(a, hw, preferred_element_type=jnp.float32) + b
        hw = jnp.dot(h.astype(bf16), w.astype(bf16),
                     preferred_element_type=jnp.float32).astype(bf16)
    h = jnp.dot(a, hw, preferred_element_type=jnp.float32) + p["b4"]
    return jnp.where(h >= 0, h, p["alpha"] * h)


if __name__ == "__main__":
    key = jax.random.PRNGKey(0)
    k_x, k_e, k_w, k_p = jax.random.split(key, 4)

    num_nodes = 200          # pads to 256
    in_channels = 4
    hidden_channels = 32     # padded to 128 lanes inside encoder_forward
    num_edges = 600

    x = jax.random.normal(k_x, (num_nodes, in_channels), jnp.float32)
    edge_index = jax.random.randint(k_e, (2, num_edges), 0, num_nodes, jnp.int32)
    edge_weight = jax.random.uniform(k_w, (num_edges,), jnp.float32, 0.1, 1.0)

    a_hat = gcn_norm_dense(edge_index, edge_weight, num_nodes)
    params = init_params(k_p, in_channels, hidden_channels)

    ref = reference_forward(a_hat, x, params)

    # Fused (A-resident) path — the default for this graph size.
    out_fused = jax.block_until_ready(encoder_forward(a_hat, x, params))
    assert out_fused.shape == (num_nodes, hidden_channels)
    assert jnp.allclose(out_fused, ref, atol=2e-2, rtol=2e-2), "fused path mismatch"

    # Tiled (streamed-A, resident-hw) path — exercised explicitly at small tiles.
    out_tiled = jax.block_until_ready(
        encoder_forward(a_hat, x, params, force_tiled=True, tm=128, tk=128))
    assert out_tiled.shape == (num_nodes, hidden_channels)
    assert jnp.allclose(out_tiled, ref, atol=2e-2, rtol=2e-2), "tiled path mismatch"

    print("KERNEL_OK")
</pallas_src>

<mosaic_0001>
module attributes {stable_mosaic.version = 11 : i64} {
  func.func @gcn_fused_kernel(%arg0: memref<256x256xbf16, #tpu.memory_space<vmem>>, %arg1: memref<256x128xbf16, #tpu.memory_space<vmem>>, %arg2: memref<1x128xf32, #tpu.memory_space<vmem>>, %arg3: memref<1x128xf32, #tpu.memory_space<vmem>>, %arg4: memref<1x128xf32, #tpu.memory_space<vmem>>, %arg5: memref<1x128xf32, #tpu.memory_space<vmem>>, %arg6: memref<128x128xbf16, #tpu.memory_space<vmem>>, %arg7: memref<128x128xbf16, #tpu.memory_space<vmem>>, %arg8: memref<128x128xbf16, #tpu.memory_space<vmem>>, %arg9: memref<1x128xf32, #tpu.memory_space<vmem>>, %arg10: memref<256x128xf32, #tpu.memory_space<vmem>>) attributes {dimension_semantics = [], scalar_prefetch = 0 : i64, scratch_operands = 0 : i64, tpu.core_type = #tpu.core_type<tc>} {
    %c0 = arith.constant 0 : index
    %c0_0 = arith.constant 0 : index
    %0 = vector.load %arg1[%c0, %c0_0] : memref<256x128xbf16, #tpu.memory_space<vmem>>, vector<256x128xbf16>
    %c0_1 = arith.constant 0 : index
    %c0_2 = arith.constant 0 : index
    %1 = vector.load %arg0[%c0_1, %c0_2] : memref<256x256xbf16, #tpu.memory_space<vmem>>, vector<256x256xbf16>
    %cst = arith.constant dense<0.000000e+00> : vector<256x128xf32>
    %2 = tpu.matmul %1, %0, %cst {dimension_numbers = #tpu.dot_dimension_numbers<[1], [0], [0], [1], [0, 0, 1, 1], [], []>} : vector<256x256xbf16>, vector<256x128xbf16>, vector<256x128xf32> -> vector<256x128xf32>
    %c0_3 = arith.constant 0 : index
    %c0_4 = arith.constant 0 : index
    %3 = vector.load %arg2[%c0_3, %c0_4] : memref<1x128xf32, #tpu.memory_space<vmem>>, vector<1x128xf32>
    %4 = vector.broadcast %3 : vector<1x128xf32> to vector<256x128xf32>
    %5 = arith.addf %2, %4 : vector<256x128xf32>
    %6 = arith.truncf %5 : vector<256x128xf32> to vector<256x128xbf16>
    %c0_5 = arith.constant 0 : index
    %c0_6 = arith.constant 0 : index
    %7 = vector.load %arg6[%c0_5, %c0_6] : memref<128x128xbf16, #tpu.memory_space<vmem>>, vector<128x128xbf16>
    %cst_7 = arith.constant dense<0.000000e+00> : vector<256x128xf32>
    %8 = tpu.matmul %6, %7, %cst_7 {dimension_numbers = #tpu.dot_dimension_numbers<[1], [0], [0], [1], [0, 0, 1, 1], [], []>} : vector<256x128xbf16>, vector<128x128xbf16>, vector<256x128xf32> -> vector<256x128xf32>
    %9 = arith.truncf %8 : vector<256x128xf32> to vector<256x128xbf16>
    %c0_8 = arith.constant 0 : index
    %c0_9 = arith.constant 0 : index
    %10 = vector.load %arg0[%c0_8, %c0_9] : memref<256x256xbf16, #tpu.memory_space<vmem>>, vector<256x256xbf16>
    %cst_10 = arith.constant dense<0.000000e+00> : vector<256x128xf32>
    %11 = tpu.matmul %10, %9, %cst_10 {dimension_numbers = #tpu.dot_dimension_numbers<[1], [0], [0], [1], [0, 0, 1, 1], [], []>} : vector<256x256xbf16>, vector<256x128xbf16>, vector<256x128xf32> -> vector<256x128xf32>
    %c0_11 = arith.constant 0 : index
    %c0_12 = arith.constant 0 : index
    %12 = vector.load %arg3[%c0_11, %c0_12] : memref<1x128xf32, #tpu.memory_space<vmem>>, vector<1x128xf32>
    %13 = vector.broadcast %12 : vector<1x128xf32> to vector<256x128xf32>
    %14 = arith.addf %11, %13 : vector<256x128xf32>
    %15 = arith.truncf %14 : vector<256x128xf32> to vector<256x128xbf16>
    %c0_13 = arith.constant 0 : index
    %c0_14 = arith.constant 0 : index
    %16 = vector.load %arg7[%c0_13, %c0_14] : memref<128x128xbf16, #tpu.memory_space<vmem>>, vector<128x128xbf16>
    %cst_15 = arith.constant dense<0.000000e+00> : vector<256x128xf32>
    %17 = tpu.matmul %15, %16, %cst_15 {dimension_numbers = #tpu.dot_dimension_numbers<[1], [0], [0], [1], [0, 0, 1, 1], [], []>} : vector<256x128xbf16>, vector<128x128xbf16>, vector<256x128xf32> -> vector<256x128xf32>
    %18 = arith.truncf %17 : vector<256x128xf32> to vector<256x128xbf16>
    %c0_16 = arith.constant 0 : index
    %c0_17 = arith.constant 0 : index
    %19 = vector.load %arg0[%c0_16, %c0_17] : memref<256x256xbf16, #tpu.memory_space<vmem>>, vector<256x256xbf16>
    %cst_18 = arith.constant dense<0.000000e+00> : vector<256x128xf32>
    %20 = tpu.matmul %19, %18, %cst_18 {dimension_numbers = #tpu.dot_dimension_numbers<[1], [0], [0], [1], [0, 0, 1, 1], [], []>} : vector<256x256xbf16>, vector<256x128xbf16>, vector<256x128xf32> -> vector<256x128xf32>
    %c0_19 = arith.constant 0 : index
    %c0_20 = arith.constant 0 : index
    %21 = vector.load %arg4[%c0_19, %c0_20] : memref<1x128xf32, #tpu.memory_space<vmem>>, vector<1x128xf32>
    %22 = vector.broadcast %21 : vector<1x128xf32> to vector<256x128xf32>
    %23 = arith.addf %20, %22 : vector<256x128xf32>
    %24 = arith.truncf %23 : vector<256x128xf32> to vector<256x128xbf16>
    %c0_21 = arith.constant 0 : index
    %c0_22 = arith.constant 0 : index
    %25 = vector.load %arg8[%c0_21, %c0_22] : memref<128x128xbf16, #tpu.memory_space<vmem>>, vector<128x128xbf16>
    %cst_23 = arith.constant dense<0.000000e+00> : vector<256x128xf32>
    %26 = tpu.matmul %24, %25, %cst_23 {dimension_numbers = #tpu.dot_dimension_numbers<[1], [0], [0], [1], [0, 0, 1, 1], [], []>} : vector<256x128xbf16>, vector<128x128xbf16>, vector<256x128xf32> -> vector<256x128xf32>
    %27 = arith.truncf %26 : vector<256x128xf32> to vector<256x128xbf16>
    %c0_24 = arith.constant 0 : index
    %c0_25 = arith.constant 0 : index
    %28 = vector.load %arg0[%c0_24, %c0_25] : memref<256x256xbf16, #tpu.memory_space<vmem>>, vector<256x256xbf16>
    %cst_26 = arith.constant dense<0.000000e+00> : vector<256x128xf32>
    %29 = tpu.matmul %28, %27, %cst_26 {dimension_numbers = #tpu.dot_dimension_numbers<[1], [0], [0], [1], [0, 0, 1, 1], [], []>} : vector<256x256xbf16>, vector<256x128xbf16>, vector<256x128xf32> -> vector<256x128xf32>
    %c0_27 = arith.constant 0 : index
    %c0_28 = arith.constant 0 : index
    %30 = vector.load %arg5[%c0_27, %c0_28] : memref<1x128xf32, #tpu.memory_space<vmem>>, vector<1x128xf32>
    %31 = vector.broadcast %30 : vector<1x128xf32> to vector<256x128xf32>
    %32 = arith.addf %29, %31 : vector<256x128xf32>
    %cst_29 = arith.constant 0.000000e+00 : f32
    %33 = vector.broadcast %cst_29 : f32 to vector<256x128xf32>
    %34 = arith.cmpf oge, %32, %33 : vector<256x128xf32>
    %c0_30 = arith.constant 0 : index
    %c0_31 = arith.constant 0 : index
    %35 = vector.load %arg9[%c0_30, %c0_31] : memref<1x128xf32, #tpu.memory_space<vmem>>, vector<1x128xf32>
    %36 = vector.broadcast %35 : vector<1x128xf32> to vector<256x128xf32>
    %37 = arith.mulf %36, %32 : vector<256x128xf32>
    %38 = arith.select %34, %32, %37 : vector<256x128xi1>, vector<256x128xf32>
    %c0_32 = arith.constant 0 : index
    %c0_33 = arith.constant 0 : index
    %39 = vector.load %arg10[%c0_32, %c0_33] : memref<256x128xf32, #tpu.memory_space<vmem>>, vector<256x128xf32>
    tpu.vector_store %arg10[%c0_32, %c0_33], %38 {strides = array<i32>} : memref<256x128xf32, #tpu.memory_space<vmem>>, vector<256x128xf32>,
    return
  }
}

</mosaic_0001>

<llo_original>
// kernel: tpu_custom_call.1
$region0: #{tpu_custom_call.1}
  #allocation0 [shape = 'u32[]', space=smem, size = 0x4, offset = 0x4, fixed_abs, tag = 'smem constant byte address 0x4 - core index']
  #allocation1 [shape = 'u32[144,128]{1,0:T(1,128)}', space=vmem, size = 0x12000, scoped, tag = 'internal scratch']
  %s0 = inlined_call_operand.hbm [shape: bf16[256,256], index: 0, kind: input, shape index: {}]
  %s1 = inlined_call_operand.hbm [shape: bf16[256,128], index: 1, kind: input, shape index: {}]
  %s2 = inlined_call_operand.vmem [shape: f32[1,128], index: 2, kind: input, shape index: {}]
  %s3 = inlined_call_operand.vmem [shape: f32[1,128], index: 3, kind: input, shape index: {}]
  %s4 = inlined_call_operand.vmem [shape: f32[1,128], index: 4, kind: input, shape index: {}]
  %s5 = inlined_call_operand.vmem [shape: f32[1,128], index: 5, kind: input, shape index: {}]
  %s6 = inlined_call_operand.hbm [shape: bf16[128,128], index: 6, kind: input, shape index: {}]
  %s7 = inlined_call_operand.hbm [shape: bf16[128,128], index: 7, kind: input, shape index: {}]
  %s8 = inlined_call_operand.hbm [shape: bf16[128,128], index: 8, kind: input, shape index: {}]
  %s9 = inlined_call_operand.vmem [shape: f32[1,128], index: 9, kind: input, shape index: {}]
  %s10 = inlined_call_operand.hbm [shape: f32[256,128], index: 10, kind: output, shape index: {}]
  %s11 = sld [smem:[#allocation0]]
  $region70: #{tpu_custom_call.1} parent=0
    _
  %s13 = ssub.s32 1, %s11
  %s14 = scalar_select 0, %s13, %s11
  $region1: #{tpu_custom_call.1} parent=0
    #allocation2 [shape = 'u8[131072]{0}', space=vmem, size = 0x20000, scoped, tag = 'input window, operand 0, single buffered']
    #allocation3 [shape = 's32[1]{0}', space=sflag, size = 0x4, scoped, tag = 'scoped memory for tpu_custom_call.1']
    #allocation4 [shape = 's32[1]{0}', space=sflag, size = 0x4, scoped, tag = 'scoped memory for tpu_custom_call.1']
    #allocation5 [shape = 'u8[65536]{0}', space=vmem, size = 0x10000, scoped, tag = 'input window, operand 1, single buffered']
    #allocation6 [shape = 's32[1]{0}', space=sflag, size = 0x4, scoped, tag = 'scoped memory for tpu_custom_call.1']
    #allocation7 [shape = 'u8[32768]{0}', space=vmem, size = 0x8000, scoped, tag = 'input window, operand 6, single buffered']
    #allocation8 [shape = 'u8[32768]{0}', space=vmem, size = 0x8000, scoped, tag = 'input window, operand 7, single buffered']
    #allocation9 [shape = 's32[1]{0}', space=sflag, size = 0x4, scoped, tag = 'scoped memory for tpu_custom_call.1']
    #allocation10 [shape = 'u8[32768]{0}', space=vmem, size = 0x8000, scoped, tag = 'input window, operand 8, single buffered']
    #allocation11 [shape = 'u8[131072]{0}', space=vmem, size = 0x20000, scoped, tag = 'output window, operand 0, single buffered']
    %15 = vsyncpa [#allocation3], 0
    %16 = vsyncpa [#allocation6], 0
    %17 = vsyncpa [#allocation9], 0
    %18 = vsyncpa [#allocation4], 0
    // Predicated region
    $region2: #{tpu_custom_call.1} parent=1 // pred_check
      _
    $region3: #{tpu_custom_call.1} parent=1 // pred_check_branch
      %20 = sbr.rel (0) target = $region5
    $region4: #{tpu_custom_call.1} parent=1 // pred_region
      %s22 = ssub.s32 4096, 4096
      %23 = vsyncadd [#allocation3], %s22
      %s24 = sshll.u32 [#allocation2], 4
      %s25 = int_to_ptr.vmem [resolvable:$true] %s24
      %30 = dma.hbm_to_vmem [thread:$0]  %s0, 4096, %s25, [#allocation3], 128, 128, 8
    $region5: #{tpu_custom_call.1} parent=1 // pred_fallthru
      _
    // Predicated region
    $region6: #{tpu_custom_call.1} parent=1 // pred_check
      _
    $region7: #{tpu_custom_call.1} parent=1 // pred_check_branch
      %32 = sbr.rel (0) target = $region9
    $region8: #{tpu_custom_call.1} parent=1 // pred_region
      %s34 = ssub.s32 2048, 2048
      %35 = vsyncadd [#allocation6], %s34
      %s36 = sshll.u32 [#allocation5], 4
      %s37 = int_to_ptr.vmem [resolvable:$true] %s36
      %42 = dma.hbm_to_vmem [thread:$0]  %s1, 2048, %s37, [#allocation6], 64, 64, 4
    $region9: #{tpu_custom_call.1} parent=1 // pred_fallthru
      _
    // Predicated region
    $region10: #{tpu_custom_call.1} parent=1 // pred_check
      _
    $region11: #{tpu_custom_call.1} parent=1 // pred_check_branch
      %44 = sbr.rel (0) target = $region13
    $region12: #{tpu_custom_call.1} parent=1 // pred_region
      _
    $region13: #{tpu_custom_call.1} parent=1 // pred_fallthru
      _
    // Predicated region
    $region14: #{tpu_custom_call.1} parent=1 // pred_check
      _
    $region15: #{tpu_custom_call.1} parent=1 // pred_check_branch
      %46 = sbr.rel (0) target = $region17
    $region16: #{tpu_custom_call.1} parent=1 // pred_region
      _
    $region17: #{tpu_custom_call.1} parent=1 // pred_fallthru
      _
    // Predicated region
    $region18: #{tpu_custom_call.1} parent=1 // pred_check
      _
    $region19: #{tpu_custom_call.1} parent=1 // pred_check_branch
      %48 = sbr.rel (0) target = $region21
    $region20: #{tpu_custom_call.1} parent=1 // pred_region
      _
    $region21: #{tpu_custom_call.1} parent=1 // pred_fallthru
      _
    // Predicated region
    $region22: #{tpu_custom_call.1} parent=1 // pred_check
      _
    $region23: #{tpu_custom_call.1} parent=1 // pred_check_branch
      %50 = sbr.rel (0) target = $region25
    $region24: #{tpu_custom_call.1} parent=1 // pred_region
      _
    $region25: #{tpu_custom_call.1} parent=1 // pred_fallthru
      _
    // Predicated region
    $region26: #{tpu_custom_call.1} parent=1 // pred_check
      _
    $region27: #{tpu_custom_call.1} parent=1 // pred_check_branch
      %52 = sbr.rel (0) target = $region29
    $region28: #{tpu_custom_call.1} parent=1 // pred_region
      %s54 = ssub.s32 1024, 1024
      %55 = vsyncadd [#allocation6], %s54
      %s56 = sshll.u32 [#allocation7], 4
      %s57 = int_to_ptr.vmem [resolvable:$true] %s56
      %62 = dma.hbm_to_vmem [thread:$0]  %s6, 1024, %s57, [#allocation6], 64, 64, 4
    $region29: #{tpu_custom_call.1} parent=1 // pred_fallthru
      _
    // Predicated region
    $region30: #{tpu_custom_call.1} parent=1 // pred_check
      _
    $region31: #{tpu_custom_call.1} parent=1 // pred_check_branch
      %64 = sbr.rel (0) target = $region33
    $region32: #{tpu_custom_call.1} parent=1 // pred_region
      %s66 = ssub.s32 1024, 1024
      %67 = vsyncadd [#allocation9], %s66
      %s68 = sshll.u32 [#allocation8], 4
      %s69 = int_to_ptr.vmem [resolvable:$true] %s68
      %74 = dma.hbm_to_vmem [thread:$0]  %s7, 1024, %s69, [#allocation9], 64, 64, 4
    $region33: #{tpu_custom_call.1} parent=1 // pred_fallthru
      _
    // Predicated region
    $region34: #{tpu_custom_call.1} parent=1 // pred_check
      _
    $region35: #{tpu_custom_call.1} parent=1 // pred_check_branch
      %76 = sbr.rel (0) target = $region37
    $region36: #{tpu_custom_call.1} parent=1 // pred_region
      %s78 = ssub.s32 1024, 1024
      %79 = vsyncadd [#allocation9], %s78
      %s80 = sshll.u32 [#allocation10], 4
      %s81 = int_to_ptr.vmem [resolvable:$true] %s80
      %86 = dma.hbm_to_vmem [thread:$0]  %s8, 1024, %s81, [#allocation9], 64, 64, 4
    $region37: #{tpu_custom_call.1} parent=1 // pred_fallthru
      _
    // Predicated region
    $region38: #{tpu_custom_call.1} parent=1 // pred_check
      _
    $region39: #{tpu_custom_call.1} parent=1 // pred_check_branch
      %88 = sbr.rel (0) target = $region41
    $region40: #{tpu_custom_call.1} parent=1 // pred_region
      _
    $region41: #{tpu_custom_call.1} parent=1 // pred_fallthru
      _
    // Predicated region
    $region42: #{tpu_custom_call.1} parent=1 // pred_check
      _
    $region43: #{tpu_custom_call.1} parent=1 // pred_check_branch
      %90 = sbr.rel (0) target = $region45
    $region44: #{tpu_custom_call.1} parent=1 // pred_region
      %91 = dma.done [#allocation3], 4096
    $region45: #{tpu_custom_call.1} parent=1 // pred_fallthru
      _
    // Predicated region
    $region46: #{tpu_custom_call.1} parent=1 // pred_check
      _
    $region47: #{tpu_custom_call.1} parent=1 // pred_check_branch
      %93 = sbr.rel (0) target = $region49
    $region48: #{tpu_custom_call.1} parent=1 // pred_region
      %94 = dma.done [#allocation6], 2048
    $region49: #{tpu_custom_call.1} parent=1 // pred_fallthru
      _
    // Predicated region
    $region50: #{tpu_custom_call.1} parent=1 // pred_check
      _
    $region51: #{tpu_custom_call.1} parent=1 // pred_check_branch
      %96 = sbr.rel (0) target = $region53
    $region52: #{tpu_custom_call.1} parent=1 // pred_region
      %97 = dma.done [#allocation6], 1024
    $region53: #{tpu_custom_call.1} parent=1 // pred_fallthru
      _
    // Predicated region
    $region54: #{tpu_custom_call.1} parent=1 // pred_check
      _
    $region55: #{tpu_custom_call.1} parent=1 // pred_check_branch
      %99 = sbr.rel (0) target = $region57
    $region56: #{tpu_custom_call.1} parent=1 // pred_region
      %100 = dma.done [#allocation9], 1024
    $region57: #{tpu_custom_call.1} parent=1 // pred_fallthru
      _
    // Predicated region
    $region58: #{tpu_custom_call.1} parent=1 // pred_check
      _
    $region59: #{tpu_custom_call.1} parent=1 // pred_check_branch
      %102 = sbr.rel (0) target = $region61
    $region60: #{tpu_custom_call.1} parent=1 // pred_region
      %103 = dma.done [#allocation9], 1024
    $region61: #{tpu_custom_call.1} parent=1 // pred_fallthru
      _
    %v105 = vld [vmem:[#allocation5] sm:$0xf]
    %v106 = vld [vmem:[#allocation5 + $0x4] sm:$0xf]
    %v107 = vld [vmem:[#allocation5 + $0x8] sm:$0xf]
    %v108 = vld [vmem:[#allocation5 + $0xc] sm:$0xf]
    %v109 = vld [vmem:[#allocation5 + $0x10] sm:$0xf]
    %v110 = vld [vmem:[#allocation5 + $0x14] sm:$0xf]
    %v111 = vld [vmem:[#allocation5 + $0x18] sm:$0xf]
    %v112 = vld [vmem:[#allocation5 + $0x1c] sm:$0xf]
    %v113 = vld [vmem:[#allocation5 + $0x20] sm:$0xf]
    %v114 = vld [vmem:[#allocation5 + $0x24] sm:$0xf]
    %v115 = vld [vmem:[#allocation5 + $0x28] sm:$0xf]
    %v116 = vld [vmem:[#allocation5 + $0x2c] sm:$0xf]
    %v117 = vld [vmem:[#allocation5 + $0x30] sm:$0xf]
    %v118 = vld [vmem:[#allocation5 + $0x34] sm:$0xf]
    %v119 = vld [vmem:[#allocation5 + $0x38] sm:$0xf]
    %v120 = vld [vmem:[#allocation5 + $0x3c] sm:$0xf]
    %v121 = vld [vmem:[#allocation5 + $0x40] sm:$0xf]
    %v122 = vld [vmem:[#allocation5 + $0x44] sm:$0xf]
    %v123 = vld [vmem:[#allocation5 + $0x48] sm:$0xf]
    %v124 = vld [vmem:[#allocation5 + $0x4c] sm:$0xf]
    %v125 = vld [vmem:[#allocation5 + $0x50] sm:$0xf]
    %v126 = vld [vmem:[#allocation5 + $0x54] sm:$0xf]
    %v127 = vld [vmem:[#allocation5 + $0x58] sm:$0xf]
    %v128 = vld [vmem:[#allocation5 + $0x5c] sm:$0xf]
    %v129 = vld [vmem:[#allocation5 + $0x60] sm:$0xf]
    %v130 = vld [vmem:[#allocation5 + $0x64] sm:$0xf]
    %v131 = vld [vmem:[#allocation5 + $0x68] sm:$0xf]
    %v132 = vld [vmem:[#allocation5 + $0x6c] sm:$0xf]
    %v133 = vld [vmem:[#allocation5 + $0x70] sm:$0xf]
    %v134 = vld [vmem:[#allocation5 + $0x74] sm:$0xf]
    %v135 = vld [vmem:[#allocation5 + $0x78] sm:$0xf]
    %v136 = vld [vmem:[#allocation5 + $0x7c] sm:$0xf]
    %v137 = vld [vmem:[#allocation2] sm:$0xff]
    %v138 = vld [vmem:[#allocation2 + $0x8] sm:$0xff]
    %v139 = vld [vmem:[#allocation2 + $0x10] sm:$0xff]
    %v140 = vld [vmem:[#allocation2 + $0x18] sm:$0xff]
    %v141 = vld [vmem:[#allocation2 + $0x20] sm:$0xff]
    %v142 = vld [vmem:[#allocation2 + $0x28] sm:$0xff]
    %v143 = vld [vmem:[#allocation2 + $0x30] sm:$0xff]
    %v144 = vld [vmem:[#allocation2 + $0x38] sm:$0xff]
    %v145 = vld [vmem:[#allocation2 + $0x40] sm:$0xff]
    %v146 = vld [vmem:[#allocation2 + $0x48] sm:$0xff]
    %v147 = vld [vmem:[#allocation2 + $0x50] sm:$0xff]
    %v148 = vld [vmem:[#allocation2 + $0x58] sm:$0xff]
    %v149 = vld [vmem:[#allocation2 + $0x60] sm:$0xff]
    %v150 = vld [vmem:[#allocation2 + $0x68] sm:$0xff]
    %v151 = vld [vmem:[#allocation2 + $0x70] sm:$0xff]
    %v152 = vld [vmem:[#allocation2 + $0x78] sm:$0xff]
    %v153 = vld [vmem:[#allocation2 + $0x80] sm:$0xff]
    %v154 = vld [vmem:[#allocation2 + $0x88] sm:$0xff]
    %v155 = vld [vmem:[#allocation2 + $0x90] sm:$0xff]
    %v156 = vld [vmem:[#allocation2 + $0x98] sm:$0xff]
    %v157 = vld [vmem:[#allocation2 + $0xa0] sm:$0xff]
    %v158 = vld [vmem:[#allocation2 + $0xa8] sm:$0xff]
    %v159 = vld [vmem:[#allocation2 + $0xb0] sm:$0xff]
    %v160 = vld [vmem:[#allocation2 + $0xb8] sm:$0xff]
    %v161 = vld [vmem:[#allocation2 + $0xc0] sm:$0xff]
    %v162 = vld [vmem:[#allocation2 + $0xc8] sm:$0xff]
    %v163 = vld [vmem:[#allocation2 + $0xd0] sm:$0xff]
    %v164 = vld [vmem:[#allocation2 + $0xd8] sm:$0xff]
    %v165 = vld [vmem:[#allocation2 + $0xe0] sm:$0xff]
    %v166 = vld [vmem:[#allocation2 + $0xe8] sm:$0xff]
    %v167 = vld [vmem:[#allocation2 + $0xf0] sm:$0xff]
    %v168 = vld [vmem:[#allocation2 + $0xf8] sm:$0xff]
    %v169 = vld [vmem:[%s2] sm:$0x1]
    %v171 = vlaneseq
    %v172 = vshrl.u32 %v171, 7
    %v173 = vsub.s32 0, %v172
    %v174 = vrot.slane %v169, %v173
    %v208 = vunpack.c.l.b16 %v137
    %v209 = vunpack.c.h.b16 %v137
    %v210 = vunpack.c.l.b16 %v138
    %v211 = vunpack.c.h.b16 %v138
    %v212 = vunpack.c.l.b16 %v139
    %v213 = vunpack.c.h.b16 %v139
    %v214 = vunpack.c.l.b16 %v140
    %v215 = vunpack.c.h.b16 %v140
    %v216 = vunpack.c.l.b16 %v141
    %v217 = vunpack.c.h.b16 %v141
    %v218 = vunpack.c.l.b16 %v142
    %v219 = vunpack.c.h.b16 %v142
    %v220 = vunpack.c.l.b16 %v143
    %v221 = vunpack.c.h.b16 %v143
    %v222 = vunpack.c.l.b16 %v144
    %v223 = vunpack.c.h.b16 %v144
    %v224 = vunpack.c.l.b16 %v145
    %v225 = vunpack.c.h.b16 %v145
    %v226 = vunpack.c.l.b16 %v146
    %v227 = vunpack.c.h.b16 %v146
    %v228 = vunpack.c.l.b16 %v147
    %v229 = vunpack.c.h.b16 %v147
    %v230 = vunpack.c.l.b16 %v148
    %v231 = vunpack.c.h.b16 %v148
    %v232 = vunpack.c.l.b16 %v149
    %v233 = vunpack.c.h.b16 %v149
    %v234 = vunpack.c.l.b16 %v150
    %v235 = vunpack.c.h.b16 %v150
    %v236 = vunpack.c.l.b16 %v151
    %v237 = vunpack.c.h.b16 %v151
    %v238 = vunpack.c.l.b16 %v152
    %v239 = vunpack.c.h.b16 %v152
    %v240 = vunpack.c.l.b16 %v153
    %v241 = vunpack.c.h.b16 %v153
    %v242 = vunpack.c.l.b16 %v154
    %v243 = vunpack.c.h.b16 %v154
    %v244 = vunpack.c.l.b16 %v155
    %v245 = vunpack.c.h.b16 %v155
    %v246 = vunpack.c.l.b16 %v156
    %v247 = vunpack.c.h.b16 %v156
    %v248 = vunpack.c.l.b16 %v157
    %v249 = vunpack.c.h.b16 %v157
    %v250 = vunpack.c.l.b16 %v158
    %v251 = vunpack.c.h.b16 %v158
    %v252 = vunpack.c.l.b16 %v159
    %v253 = vunpack.c.h.b16 %v159
    %v254 = vunpack.c.l.b16 %v160
    %v255 = vunpack.c.h.b16 %v160
    %v256 = vunpack.c.l.b16 %v161
    %v257 = vunpack.c.h.b16 %v161
    %v258 = vunpack.c.l.b16 %v162
    %v259 = vunpack.c.h.b16 %v162
    %v260 = vunpack.c.l.b16 %v163
    %v261 = vunpack.c.h.b16 %v163
    %v262 = vunpack.c.l.b16 %v164
    %v263 = vunpack.c.h.b16 %v164
    %v264 = vunpack.c.l.b16 %v165
    %v265 = vunpack.c.h.b16 %v165
    %v266 = vunpack.c.l.b16 %v166
    %v267 = vunpack.c.h.b16 %v166
    %v268 = vunpack.c.l.b16 %v167
    %v269 = vunpack.c.h.b16 %v167
    %v270 = vunpack.c.l.b16 %v168
    %v271 = vunpack.c.h.b16 %v168
    %v272 = vpack.c.b16 %v210, %v208
    %v273 = vpack.c.b16 %v211, %v209
    %v274 = vpack.c.b16 %v214, %v212
    %v275 = vpack.c.b16 %v215, %v213
    %v276 = vpack.c.b16 %v218, %v216
    %v277 = vpack.c.b16 %v219, %v217
    %v278 = vpack.c.b16 %v222, %v220
    %v279 = vpack.c.b16 %v223, %v221
    %v280 = vpack.c.b16 %v226, %v224
    %v281 = vpack.c.b16 %v227, %v225
    %v282 = vpack.c.b16 %v230, %v228
    %v283 = vpack.c.b16 %v231, %v229
    %v284 = vpack.c.b16 %v234, %v232
    %v285 = vpack.c.b16 %v235, %v233
    %v286 = vpack.c.b16 %v238, %v236
    %v287 = vpack.c.b16 %v239, %v237
    %v288 = vpack.c.b16 %v242, %v240
    %v289 = vpack.c.b16 %v243, %v241
    %v290 = vpack.c.b16 %v246, %v244
    %v291 = vpack.c.b16 %v247, %v245
    %v292 = vpack.c.b16 %v250, %v248
    %v293 = vpack.c.b16 %v251, %v249
    %v294 = vpack.c.b16 %v254, %v252
    %v295 = vpack.c.b16 %v255, %v253
    %v296 = vpack.c.b16 %v258, %v256
    %v297 = vpack.c.b16 %v259, %v257
    %v298 = vpack.c.b16 %v262, %v260
    %v299 = vpack.c.b16 %v263, %v261
    %v300 = vpack.c.b16 %v266, %v264
    %v301 = vpack.c.b16 %v267, %v265
    %v302 = vpack.c.b16 %v270, %v268
    %v303 = vpack.c.b16 %v271, %v269
    %v368 = vunpack.c.l.b16 %v105
    %v369 = vunpack.c.l.b16 %v106
    %v370 = vunpack.c.l.b16 %v107
    %v371 = vunpack.c.l.b16 %v108
    %v372 = vunpack.c.l.b16 %v109
    %v373 = vunpack.c.l.b16 %v110
    %v374 = vunpack.c.l.b16 %v111
    %v375 = vunpack.c.l.b16 %v112
    %v376 = vunpack.c.l.b16 %v113
    %v377 = vunpack.c.l.b16 %v114
    %v378 = vunpack.c.l.b16 %v115
    %v379 = vunpack.c.l.b16 %v116
    %v380 = vunpack.c.l.b16 %v117
    %v381 = vunpack.c.l.b16 %v118
    %v382 = vunpack.c.l.b16 %v119
    %v383 = vunpack.c.l.b16 %v120
    %v384 = vunpack.c.l.b16 %v121
    %v385 = vunpack.c.l.b16 %v122
    %v386 = vunpack.c.l.b16 %v123
    %v387 = vunpack.c.l.b16 %v124
    %v388 = vunpack.c.l.b16 %v125
    %v389 = vunpack.c.l.b16 %v126
    %v390 = vunpack.c.l.b16 %v127
    %v391 = vunpack.c.l.b16 %v128
    %v392 = vunpack.c.l.b16 %v129
    %v393 = vunpack.c.l.b16 %v130
    %v394 = vunpack.c.l.b16 %v131
    %v395 = vunpack.c.l.b16 %v132
    %v396 = vunpack.c.l.b16 %v133
    %v397 = vunpack.c.l.b16 %v134
    %v398 = vunpack.c.l.b16 %v135
    %v399 = vunpack.c.l.b16 %v136
    %v400 = vpack.c.b16 %v369, %v368
    %v401 = vpack.c.b16 %v371, %v370
    %v402 = vpack.c.b16 %v373, %v372
    %v403 = vpack.c.b16 %v375, %v374
    %v404 = vpack.c.b16 %v377, %v376
    %v405 = vpack.c.b16 %v379, %v378
    %v406 = vpack.c.b16 %v381, %v380
    %v407 = vpack.c.b16 %v383, %v382
    %v408 = vpack.c.b16 %v385, %v384
    %v409 = vpack.c.b16 %v387, %v386
    %v410 = vpack.c.b16 %v389, %v388
    %v411 = vpack.c.b16 %v391, %v390
    %v412 = vpack.c.b16 %v393, %v392
    %v413 = vpack.c.b16 %v395, %v394
    %v414 = vpack.c.b16 %v397, %v396
    %v415 = vpack.c.b16 %v399, %v398
    %432 = vmatprep.subr.bf16.mxu0 0
    %433 = vmatpush1.bf16.msra.mxu0 %v400
    %434 = vmatprep.subr.bf16.mxu0 0
    %435 = vmatpush1.bf16.msra.mxu0 %v401
    %436 = vmatprep.subr.bf16.mxu0 0
    %437 = vmatpush1.bf16.msra.mxu0 %v402
    %438 = vmatprep.subr.bf16.mxu0 0
    %439 = vmatpush1.bf16.msra.mxu0 %v403
    %440 = vmatprep.subr.bf16.mxu0 0
    %441 = vmatpush1.bf16.msra.mxu0 %v404
    %442 = vmatprep.subr.bf16.mxu0 0
    %443 = vmatpush1.bf16.msra.mxu0 %v405
    %444 = vmatprep.subr.bf16.mxu0 0
    %445 = vmatpush1.bf16.msra.mxu0 %v406
    %446 = vmatprep.subr.bf16.mxu0 0
    %447 = vmatpush1.bf16.msra.mxu0 %v407
    %448 = vmatprep.subr.bf16.mxu0 0
    %449 = vmatpush1.bf16.msra.mxu0 %v408
    %450 = vmatprep.subr.bf16.mxu0 0
    %451 = vmatpush1.bf16.msra.mxu0 %v409
    %452 = vmatprep.subr.bf16.mxu0 0
    %453 = vmatpush1.bf16.msra.mxu0 %v410
    %454 = vmatprep.subr.bf16.mxu0 0
    %455 = vmatpush1.bf16.msra.mxu0 %v411
    %456 = vmatprep.subr.bf16.mxu0 0
    %457 = vmatpush1.bf16.msra.mxu0 %v412
    %458 = vmatprep.subr.bf16.mxu0 0
    %459 = vmatpush1.bf16.msra.mxu0 %v413
    %460 = vmatprep.subr.bf16.mxu0 0
    %461 = vmatpush1.bf16.msra.mxu0 %v414
    %462 = vmatprep.subr.bf16.mxu0 0
    %463 = vmatpush1.bf16.msra.mxu0 %v415
    %464 = vmatprep.mubr.bf16.mxu0 %v273
    %465 = vmatmul.mubr.bf16.gmra.mrb[0].mxu0 %v272
    %v466 = vpop.f32.mrb[0].mxu0
    %v467 = vadd.f32 %v174, %v466
    %v468 = vpop.f32.mrb[0].mxu0
    %v469 = vpop.f32.mrb[0].mxu0
    %v470 = vadd.f32 %v174, %v469
    %v471 = vpop.f32.mrb[0].mxu0
    %472 = vmatprep.mubr.bf16.mxu0 %v275
    %473 = vmatmul.mubr.bf16.gmra.mrb[0].mxu0 %v274
    %v474 = vpop.f32.mrb[0].mxu0
    %v475 = vadd.f32 %v174, %v474
    %v476 = vpop.f32.mrb[0].mxu0
    %v477 = vpop.f32.mrb[0].mxu0
    %v478 = vadd.f32 %v174, %v477
    %v479 = vpop.f32.mrb[0].mxu0
    %480 = vmatprep.mubr.bf16.mxu0 %v277
    %481 = vmatmul.mubr.bf16.gmra.mrb[0].mxu0 %v276
    %v482 = vpop.f32.mrb[0].mxu0
    %v483 = vadd.f32 %v174, %v482
    %v484 = vpop.f32.mrb[0].mxu0
    %v485 = vpop.f32.mrb[0].mxu0
    %v486 = vadd.f32 %v174, %v485
    %v487 = vpop.f32.mrb[0].mxu0
    %488 = vmatprep.mubr.bf16.mxu0 %v279
    %489 = vmatmul.mubr.bf16.gmra.mrb[0].mxu0 %v278
    %v490 = vpop.f32.mrb[0].mxu0
    %v491 = vadd.f32 %v174, %v490
    %v492 = vpop.f32.mrb[0].mxu0
    %v493 = vpop.f32.mrb[0].mxu0
    %v494 = vadd.f32 %v174, %v493
    %v495 = vpop.f32.mrb[0].mxu0
    %496 = vmatprep.mubr.bf16.mxu0 %v281
    %497 = vmatmul.mubr.bf16.gmra.mrb[0].mxu0 %v280
    %v498 = vpop.f32.mrb[0].mxu0
    %v499 = vadd.f32 %v174, %v498
    %v500 = vpop.f32.mrb[0].mxu0
    %v501 = vpop.f32.mrb[0].mxu0
    %v502 = vadd.f32 %v174, %v501
    %v503 = vpop.f32.mrb[0].mxu0
    %504 = vmatprep.mubr.bf16.mxu0 %v283
    %505 = vmatmul.mubr.bf16.gmra.mrb[0].mxu0 %v282
    %v506 = vpop.f32.mrb[0].mxu0
    %v507 = vadd.f32 %v174, %v506
    %v508 = vpop.f32.mrb[0].mxu0
    %v509 = vpop.f32.mrb[0].mxu0
    %v510 = vadd.f32 %v174, %v509
    %v511 = vpop.f32.mrb[0].mxu0
    %512 = vmatprep.mubr.bf16.mxu0 %v285
    %513 = vmatmul.mubr.bf16.gmra.mrb[0].mxu0 %v284
    %v514 = vpop.f32.mrb[0].mxu0
    %v515 = vadd.f32 %v174, %v514
    %v516 = vpop.f32.mrb[0].mxu0
    %v517 = vpop.f32.mrb[0].mxu0
    %v518 = vadd.f32 %v174, %v517
    %v519 = vpop.f32.mrb[0].mxu0
    %520 = vmatprep.mubr.bf16.mxu0 %v287
    %521 = vmatmul.mubr.bf16.gmra.mrb[0].mxu0 %v286
    %v522 = vpop.f32.mrb[0].mxu0
    %v523 = vadd.f32 %v174, %v522
    %v524 = vpop.f32.mrb[0].mxu0
    %v525 = vpop.f32.mrb[0].mxu0
    %v526 = vadd.f32 %v174, %v525
    %v527 = vpop.f32.mrb[0].mxu0
    %528 = vmatprep.mubr.bf16.mxu0 %v289
    %529 = vmatmul.mubr.bf16.gmra.mrb[0].mxu0 %v288
    %v530 = vpop.f32.mrb[0].mxu0
    %v531 = vadd.f32 %v174, %v530
    %v532 = vpop.f32.mrb[0].mxu0
    %v533 = vpop.f32.mrb[0].mxu0
    %v534 = vadd.f32 %v174, %v533
    %v535 = vpop.f32.mrb[0].mxu0
    %536 = vmatprep.mubr.bf16.mxu0 %v291
    %537 = vmatmul.mubr.bf16.gmra.mrb[0].mxu0 %v290
    %v538 = vpop.f32.mrb[0].mxu0
    %v539 = vadd.f32 %v174, %v538
    %v540 = vpop.f32.mrb[0].mxu0
    %v541 = vpop.f32.mrb[0].mxu0
    %v542 = vadd.f32 %v174, %v541
    %v543 = vpop.f32.mrb[0].mxu0
    %544 = vmatprep.mubr.bf16.mxu0 %v293
    %545 = vmatmul.mubr.bf16.gmra.mrb[0].mxu0 %v292
    %v546 = vpop.f32.mrb[0].mxu0
    %v547 = vadd.f32 %v174, %v546
    %v548 = vpop.f32.mrb[0].mxu0
    %v549 = vpop.f32.mrb[0].mxu0
    %v550 = vadd.f32 %v174, %v549
    %v551 = vpop.f32.mrb[0].mxu0
    %552 = vmatprep.mubr.bf16.mxu0 %v295
    %553 = vmatmul.mubr.bf16.gmra.mrb[0].mxu0 %v294
    %v554 = vpop.f32.mrb[0].mxu0
    %v555 = vadd.f32 %v174, %v554
    %v556 = vpop.f32.mrb[0].mxu0
    %v557 = vpop.f32.mrb[0].mxu0
    %v558 = vadd.f32 %v174, %v557
    %v559 = vpop.f32.mrb[0].mxu0
    %560 = vmatprep.mubr.bf16.mxu0 %v297
    %561 = vmatmul.mubr.bf16.gmra.mrb[0].mxu0 %v296
    %v562 = vpop.f32.mrb[0].mxu0
    %v563 = vadd.f32 %v174, %v562
    %v564 = vpop.f32.mrb[0].mxu0
    %v565 = vpop.f32.mrb[0].mxu0
    %v566 = vadd.f32 %v174, %v565
    %v567 = vpop.f32.mrb[0].mxu0
    %568 = vmatprep.mubr.bf16.mxu0 %v299
    %569 = vmatmul.mubr.bf16.gmra.mrb[0].mxu0 %v298
    %v570 = vpop.f32.mrb[0].mxu0
    %v571 = vadd.f32 %v174, %v570
    %v572 = vpop.f32.mrb[0].mxu0
    %v573 = vpop.f32.mrb[0].mxu0
    %v574 = vadd.f32 %v174, %v573
    %v575 = vpop.f32.mrb[0].mxu0
    %576 = vmatprep.mubr.bf16.mxu0 %v301
    %577 = vmatmul.mubr.bf16.gmra.mrb[0].mxu0 %v300
    %v578 = vpop.f32.mrb[0].mxu0
    %v579 = vadd.f32 %v174, %v578
    %v580 = vpop.f32.mrb[0].mxu0
    %v581 = vpop.f32.mrb[0].mxu0
    %v582 = vadd.f32 %v174, %v581
    %v583 = vpop.f32.mrb[0].mxu0
    %584 = vmatprep.mubr.bf16.mxu0 %v303
    %585 = vmatmul.mubr.bf16.gmra.mrb[0].mxu0 %v302
    %v586 = vpop.f32.mrb[0].mxu0
    %v587 = vadd.f32 %v174, %v586
    %v588 = vpop.f32.mrb[0].mxu0
    %v589 = vpop.f32.mrb[0].mxu0
    %v590 = vadd.f32 %v174, %v589
    %v591 = vpop.f32.mrb[0].mxu0
    %592 = vdwg.mxu0
    %v593 = vpack.c.bf16 %v470, %v467
    %v594 = vpack.c.bf16 %v478, %v475
    %v595 = vpack.c.bf16 %v486, %v483
    %v596 = vpack.c.bf16 %v494, %v491
    %v597 = vpack.c.bf16 %v502, %v499
    %v598 = vpack.c.bf16 %v510, %v507
    %v599 = vpack.c.bf16 %v518, %v515
    %v600 = vpack.c.bf16 %v526, %v523
    %v601 = vpack.c.bf16 %v534, %v531
    %v602 = vpack.c.bf16 %v542, %v539
    %v603 = vpack.c.bf16 %v550, %v547
    %v604 = vpack.c.bf16 %v558, %v555
    %v605 = vpack.c.bf16 %v566, %v563
    %v606 = vpack.c.bf16 %v574, %v571
    %v607 = vpack.c.bf16 %v582, %v579
    %v608 = vpack.c.bf16 %v590, %v587
    %v609 = vld [vmem:[#allocation7] sm:$0xf]
    %v610 = vld [vmem:[#allocation7 + $0x4] sm:$0xf]
    %v611 = vld [vmem:[#allocation7 + $0x8] sm:$0xf]
    %v612 = vld [vmem:[#allocation7 + $0xc] sm:$0xf]
    %v613 = vld [vmem:[#allocation7 + $0x10] sm:$0xf]
    %v614 = vld [vmem:[#allocation7 + $0x14] sm:$0xf]
    %v615 = vld [vmem:[#allocation7 + $0x18] sm:$0xf]
    %v616 = vld [vmem:[#allocation7 + $0x1c] sm:$0xf]
    %v617 = vld [vmem:[#allocation7 + $0x20] sm:$0xf]
    %v618 = vld [vmem:[#allocation7 + $0x24] sm:$0xf]
    %v619 = vld [vmem:[#allocation7 + $0x28] sm:$0xf]
    %v620 = vld [vmem:[#allocation7 + $0x2c] sm:$0xf]
    %v621 = vld [vmem:[#allocation7 + $0x30] sm:$0xf]
    %v622 = vld [vmem:[#allocation7 + $0x34] sm:$0xf]
    %v623 = vld [vmem:[#allocation7 + $0x38] sm:$0xf]
    %v624 = vld [vmem:[#allocation7 + $0x3c] sm:$0xf]
    %v641 = vunpack.c.l.b16 %v609
    %v642 = vunpack.c.l.b16 %v610
    %v643 = vunpack.c.l.b16 %v611
    %v644 = vunpack.c.l.b16 %v612
    %v645 = vunpack.c.l.b16 %v613
    %v646 = vunpack.c.l.b16 %v614
    %v647 = vunpack.c.l.b16 %v615
    %v648 = vunpack.c.l.b16 %v616
    %v649 = vunpack.c.l.b16 %v617
    %v650 = vunpack.c.l.b16 %v618
    %v651 = vunpack.c.l.b16 %v619
    %v652 = vunpack.c.l.b16 %v620
    %v653 = vunpack.c.l.b16 %v621
    %v654 = vunpack.c.l.b16 %v622
    %v655 = vunpack.c.l.b16 %v623
    %v656 = vunpack.c.l.b16 %v624
    %v657 = vpack.c.b16 %v642, %v641
    %v658 = vpack.c.b16 %v644, %v643
    %v659 = vpack.c.b16 %v646, %v645
    %v660 = vpack.c.b16 %v648, %v647
    %v661 = vpack.c.b16 %v650, %v649
    %v662 = vpack.c.b16 %v652, %v651
    %v663 = vpack.c.b16 %v654, %v653
    %v664 = vpack.c.b16 %v656, %v655
    %673 = vmatprep.subr.bf16.mxu0 0
    %674 = vmatpush1.bf16.msra.mxu0 %v657
    %675 = vmatprep.subr.bf16.mxu0 0
    %676 = vmatpush1.bf16.msra.mxu0 %v658
    %677 = vmatprep.subr.bf16.mxu0 0
    %678 = vmatpush1.bf16.msra.mxu0 %v659
    %679 = vmatprep.subr.bf16.mxu0 0
    %680 = vmatpush1.bf16.msra.mxu0 %v660
    %681 = vmatprep.subr.bf16.mxu0 0
    %682 = vmatpush1.bf16.msra.mxu0 %v661
    %683 = vmatprep.subr.bf16.mxu0 0
    %684 = vmatpush1.bf16.msra.mxu0 %v662
    %685 = vmatprep.subr.bf16.mxu0 0
    %686 = vmatpush1.bf16.msra.mxu0 %v663
    %687 = vmatprep.subr.bf16.mxu0 0
    %688 = vmatpush1.bf16.msra.mxu0 %v664
    %689 = vmatprep.subr.bf16.mxu0 0
    %690 = vmatpush1.bf16.msra.mxu0 0
    %691 = vmatprep.subr.bf16.mxu0 0
    %692 = vmatpush1.bf16.msra.mxu0 0
    %693 = vmatprep.subr.bf16.mxu0 0
    %694 = vmatpush1.bf16.msra.mxu0 0
    %695 = vmatprep.subr.bf16.mxu0 0
    %696 = vmatpush1.bf16.msra.mxu0 0
    %697 = vmatprep.subr.bf16.mxu0 0
    %698 = vmatpush1.bf16.msra.mxu0 0
    %699 = vmatprep.subr.bf16.mxu0 0
    %700 = vmatpush1.bf16.msra.mxu0 0
    %701 = vmatprep.subr.bf16.mxu0 0
    %702 = vmatpush1.bf16.msra.mxu0 0
    %703 = vmatprep.subr.bf16.mxu0 0
    %704 = vmatpush1.bf16.msra.mxu0 0
    %705 = vmatprep.mubr.bf16.mxu0 0
    %706 = vmatmul.mubr.bf16.gmra.mrb[0].mxu0 %v593
    %v707 = vpop.f32.mrb[0].mxu0
    %v708 = vadd.f32 0.0, %v707
    %v709 = vpop.f32.mrb[0].mxu0
    %v710 = vpop.f32.mrb[0].mxu0
    %v711 = vadd.f32 0.0, %v710
    %v712 = vpop.f32.mrb[0].mxu0
    %713 = vmatprep.mubr.bf16.mxu0 0
    %714 = vmatmul.mubr.bf16.gmra.mrb[0].mxu0 %v594
    %v715 = vpop.f32.mrb[0].mxu0
    %v716 = vadd.f32 0.0, %v715
    %v717 = vpop.f32.mrb[0].mxu0
    %v718 = vpop.f32.mrb[0].mxu0
    %v719 = vadd.f32 0.0, %v718
    %v720 = vpop.f32.mrb[0].mxu0
    %721 = vmatprep.mubr.bf16.mxu0 0
    %722 = vmatmul.mubr.bf16.gmra.mrb[0].mxu0 %v595
    %v723 = vpop.f32.mrb[0].mxu0
    %v724 = vadd.f32 0.0, %v723
    %v725 = vpop.f32.mrb[0].mxu0
    %v726 = vpop.f32.mrb[0].mxu0
    %v727 = vadd.f32 0.0, %v726
    %v728 = vpop.f32.mrb[0].mxu0
    %729 = vmatprep.mubr.bf16.mxu0 0
    %730 = vmatmul.mubr.bf16.gmra.mrb[0].mxu0 %v596
    %v731 = vpop.f32.mrb[0].mxu0
    %v732 = vadd.f32 0.0, %v731
    %v733 = vpop.f32.mrb[0].mxu0
    %v734 = vpop.f32.mrb[0].mxu0
    %v735 = vadd.f32 0.0, %v734
    %v736 = vpop.f32.mrb[0].mxu0
    %737 = vmatprep.mubr.bf16.mxu0 0
    %738 = vmatmul.mubr.bf16.gmra.mrb[0].mxu0 %v597
    %v739 = vpop.f32.mrb[0].mxu0
    %v740 = vadd.f32 0.0, %v739
    %v741 = vpop.f32.mrb[0].mxu0
    %v742 = vpop.f32.mrb[0].mxu0
    %v743 = vadd.f32 0.0, %v742
    %v744 = vpop.f32.mrb[0].mxu0
    %745 = vmatprep.mubr.bf16.mxu0 0
    %746 = vmatmul.mubr.bf16.gmra.mrb[0].mxu0 %v598
    %v747 = vpop.f32.mrb[0].mxu0
    %v748 = vadd.f32 0.0, %v747
    %v749 = vpop.f32.mrb[0].mxu0
    %v750 = vpop.f32.mrb[0].mxu0
    %v751 = vadd.f32 0.0, %v750
    %v752 = vpop.f32.mrb[0].mxu0
    %753 = vmatprep.mubr.bf16.mxu0 0
    %754 = vmatmul.mubr.bf16.gmra.mrb[0].mxu0 %v599
    %v755 = vpop.f32.mrb[0].mxu0
    %v756 = vadd.f32 0.0, %v755
    %v757 = vpop.f32.mrb[0].mxu0
    %v758 = vpop.f32.mrb[0].mxu0
    %v759 = vadd.f32 0.0, %v758
    %v760 = vpop.f32.mrb[0].mxu0
    %761 = vmatprep.mubr.bf16.mxu0 0
    %762 = vmatmul.mubr.bf16.gmra.mrb[0].mxu0 %v600
    %v763 = vpop.f32.mrb[0].mxu0
    %v764 = vadd.f32 0.0, %v763
    %v765 = vpop.f32.mrb[0].mxu0
    %v766 = vpop.f32.mrb[0].mxu0
    %v767 = vadd.f32 0.0, %v766
    %v768 = vpop.f32.mrb[0].mxu0
    %769 = vmatprep.mubr.bf16.mxu0 0
    %770 = vmatmul.mubr.bf16.gmra.mrb[0].mxu0 %v601
    %v771 = vpop.f32.mrb[0].mxu0
    %v772 = vadd.f32 0.0, %v771
    %v773 = vpop.f32.mrb[0].mxu0
    %v774 = vpop.f32.mrb[0].mxu0
    %v775 = vadd.f32 0.0, %v774
    %v776 = vpop.f32.mrb[0].mxu0
    %777 = vmatprep.mubr.bf16.mxu0 0
    %778 = vmatmul.mubr.bf16.gmra.mrb[0].mxu0 %v602
    %v779 = vpop.f32.mrb[0].mxu0
    %v780 = vadd.f32 0.0, %v779
    %v781 = vpop.f32.mrb[0].mxu0
    %v782 = vpop.f32.mrb[0].mxu0
    %v783 = vadd.f32 0.0, %v782
    %v784 = vpop.f32.mrb[0].mxu0
    %785 = vmatprep.mubr.bf16.mxu0 0
    %786 = vmatmul.mubr.bf16.gmra.mrb[0].mxu0 %v603
    %v787 = vpop.f32.mrb[0].mxu0
    %v788 = vadd.f32 0.0, %v787
    %v789 = vpop.f32.mrb[0].mxu0
    %v790 = vpop.f32.mrb[0].mxu0
    %v791 = vadd.f32 0.0, %v790
    %v792 = vpop.f32.mrb[0].mxu0
    %793 = vmatprep.mubr.bf16.mxu0 0
    %794 = vmatmul.mubr.bf16.gmra.mrb[0].mxu0 %v604
    %v795 = vpop.f32.mrb[0].mxu0
    %v796 = vadd.f32 0.0, %v795
    %v797 = vpop.f32.mrb[0].mxu0
    %v798 = vpop.f32.mrb[0].mxu0
    %v799 = vadd.f32 0.0, %v798
    %v800 = vpop.f32.mrb[0].mxu0
    %801 = vmatprep.mubr.bf16.mxu0 0
    %802 = vmatmul.mubr.bf16.gmra.mrb[0].mxu0 %v605
    %v803 = vpop.f32.mrb[0].mxu0
    %v804 = vadd.f32 0.0, %v803
    %v805 = vpop.f32.mrb[0].mxu0
    %v806 = vpop.f32.mrb[0].mxu0
    %v807 = vadd.f32 0.0, %v806
    %v808 = vpop.f32.mrb[0].mxu0
    %809 = vmatprep.mubr.bf16.mxu0 0
    %810 = vmatmul.mubr.bf16.gmra.mrb[0].mxu0 %v606
    %v811 = vpop.f32.mrb[0].mxu0
    %v812 = vadd.f32 0.0, %v811
    %v813 = vpop.f32.mrb[0].mxu0
    %v814 = vpop.f32.mrb[0].mxu0
    %v815 = vadd.f32 0.0, %v814
    %v816 = vpop.f32.mrb[0].mxu0
    %817 = vmatprep.mubr.bf16.mxu0 0
    %818 = vmatmul.mubr.bf16.gmra.mrb[0].mxu0 %v607
    %v819 = vpop.f32.mrb[0].mxu0
    %v820 = vadd.f32 0.0, %v819
    %v821 = vpop.f32.mrb[0].mxu0
    %v822 = vpop.f32.mrb[0].mxu0
    %v823 = vadd.f32 0.0, %v822
    %v824 = vpop.f32.mrb[0].mxu0
    %825 = vmatprep.mubr.bf16.mxu0 0
    %826 = vmatmul.mubr.bf16.gmra.mrb[0].mxu0 %v608
    %v827 = vpop.f32.mrb[0].mxu0
    %v828 = vadd.f32 0.0, %v827
    %v829 = vpop.f32.mrb[0].mxu0
    %v830 = vpop.f32.mrb[0].mxu0
    %v831 = vadd.f32 0.0, %v830
    %v832 = vpop.f32.mrb[0].mxu0
    %833 = vdwg.mxu0
    %v834 = vpack.c.bf16 %v711, %v708
    %v835 = vpack.c.bf16 %v719, %v716
    %v836 = vpack.c.bf16 %v727, %v724
    %v837 = vpack.c.bf16 %v735, %v732
    %v838 = vpack.c.bf16 %v743, %v740
    %v839 = vpack.c.bf16 %v751, %v748
    %v840 = vpack.c.bf16 %v759, %v756
    %v841 = vpack.c.bf16 %v767, %v764
    %v842 = vpack.c.bf16 %v775, %v772
    %v843 = vpack.c.bf16 %v783, %v780
    %v844 = vpack.c.bf16 %v791, %v788
    %v845 = vpack.c.bf16 %v799, %v796
    %v846 = vpack.c.bf16 %v807, %v804
    %v847 = vpack.c.bf16 %v815, %v812
    %v848 = vpack.c.bf16 %v823, %v820
    %v849 = vpack.c.bf16 %v831, %v828
    %v850 = vld [vmem:[%s3] sm:$0x1]
    %v852 = vlaneseq
    %v853 = vshrl.u32 %v852, 7
    %v854 = vsub.s32 0, %v853
    %v855 = vrot.slane %v850, %v854
    %857 = vmatprep.subr.bf16.mxu0 0
    %858 = vmatpush1.bf16.msra.mxu0 %v834
    %859 = vmatprep.subr.bf16.mxu0 0
    %860 = vmatpush1.bf16.msra.mxu0 %v835
    %861 = vmatprep.subr.bf16.mxu0 0
    %862 = vmatpush1.bf16.msra.mxu0 %v836
    %863 = vmatprep.subr.bf16.mxu0 0
    %864 = vmatpush1.bf16.msra.mxu0 %v837
    %865 = vmatprep.subr.bf16.mxu0 0
    %866 = vmatpush1.bf16.msra.mxu0 %v838
    %867 = vmatprep.subr.bf16.mxu0 0
    %868 = vmatpush1.bf16.msra.mxu0 %v839
    %869 = vmatprep.subr.bf16.mxu0 0
    %870 = vmatpush1.bf16.msra.mxu0 %v840
    %871 = vmatprep.subr.bf16.mxu0 0
    %872 = vmatpush1.bf16.msra.mxu0 %v841
    %873 = vmatprep.subr.bf16.mxu0 0
    %874 = vmatpush1.bf16.msra.mxu0 %v842
    %875 = vmatprep.subr.bf16.mxu0 0
    %876 = vmatpush1.bf16.msra.mxu0 %v843
    %877 = vmatprep.subr.bf16.mxu0 0
    %878 = vmatpush1.bf16.msra.mxu0 %v844
    %879 = vmatprep.subr.bf16.mxu0 0
    %880 = vmatpush1.bf16.msra.mxu0 %v845
    %881 = vmatprep.subr.bf16.mxu0 0
    %882 = vmatpush1.bf16.msra.mxu0 %v846
    %883 = vmatprep.subr.bf16.mxu0 0
    %884 = vmatpush1.bf16.msra.mxu0 %v847
    %885 = vmatprep.subr.bf16.mxu0 0
    %886 = vmatpush1.bf16.msra.mxu0 %v848
    %887 = vmatprep.subr.bf16.mxu0 0
    %888 = vmatpush1.bf16.msra.mxu0 %v849
    %889 = vmatprep.mubr.bf16.mxu0 %v273
    %890 = vmatmul.mubr.bf16.gmra.mrb[0].mxu0 %v272
    %v891 = vpop.f32.mrb[0].mxu0
    %v892 = vadd.f32 %v855, %v891
    %v893 = vpop.f32.mrb[0].mxu0
    %v894 = vpop.f32.mrb[0].mxu0
    %v895 = vadd.f32 %v855, %v894
    %v896 = vpop.f32.mrb[0].mxu0
    %897 = vmatprep.mubr.bf16.mxu0 %v275
    %898 = vmatmul.mubr.bf16.gmra.mrb[0].mxu0 %v274
    %v899 = vpop.f32.mrb[0].mxu0
    %v900 = vadd.f32 %v855, %v899
    %v901 = vpop.f32.mrb[0].mxu0
    %v902 = vpop.f32.mrb[0].mxu0
    %v903 = vadd.f32 %v855, %v902
    %v904 = vpop.f32.mrb[0].mxu0
    %905 = vmatprep.mubr.bf16.mxu0 %v277
    %906 = vmatmul.mubr.bf16.gmra.mrb[0].mxu0 %v276
    %v907 = vpop.f32.mrb[0].mxu0
    %v908 = vadd.f32 %v855, %v907
    %v909 = vpop.f32.mrb[0].mxu0
    %v910 = vpop.f32.mrb[0].mxu0
    %v911 = vadd.f32 %v855, %v910
    %v912 = vpop.f32.mrb[0].mxu0
    %913 = vmatprep.mubr.bf16.mxu0 %v279
    %914 = vmatmul.mubr.bf16.gmra.mrb[0].mxu0 %v278
    %v915 = vpop.f32.mrb[0].mxu0
    %v916 = vadd.f32 %v855, %v915
    %v917 = vpop.f32.mrb[0].mxu0
    %v918 = vpop.f32.mrb[0].mxu0
    %v919 = vadd.f32 %v855, %v918
    %v920 = vpop.f32.mrb[0].mxu0
    %921 = vmatprep.mubr.bf16.mxu0 %v281
    %922 = vmatmul.mubr.bf16.gmra.mrb[0].mxu0 %v280
    %v923 = vpop.f32.mrb[0].mxu0
    %v924 = vadd.f32 %v855, %v923
    %v925 = vpop.f32.mrb[0].mxu0
    %v926 = vpop.f32.mrb[0].mxu0
    %v927 = vadd.f32 %v855, %v926
    %v928 = vpop.f32.mrb[0].mxu0
    %929 = vmatprep.mubr.bf16.mxu0 %v283
    %930 = vmatmul.mubr.bf16.gmra.mrb[0].mxu0 %v282
    %v931 = vpop.f32.mrb[0].mxu0
    %v932 = vadd.f32 %v855, %v931
    %v933 = vpop.f32.mrb[0].mxu0
    %v934 = vpop.f32.mrb[0].mxu0
    %v935 = vadd.f32 %v855, %v934
    %v936 = vpop.f32.mrb[0].mxu0
    %937 = vmatprep.mubr.bf16.mxu0 %v285
    %938 = vmatmul.mubr.bf16.gmra.mrb[0].mxu0 %v284
    %v939 = vpop.f32.mrb[0].mxu0
    %v940 = vadd.f32 %v855, %v939
    %v941 = vpop.f32.mrb[0].mxu0
    %v942 = vpop.f32.mrb[0].mxu0
    %v943 = vadd.f32 %v855, %v942
    %v944 = vpop.f32.mrb[0].mxu0
    %945 = vmatprep.mubr.bf16.mxu0 %v287
    %946 = vmatmul.mubr.bf16.gmra.mrb[0].mxu0 %v286
    %v947 = vpop.f32.mrb[0].mxu0
    %v948 = vadd.f32 %v855, %v947
    %v949 = vpop.f32.mrb[0].mxu0
    %v950 = vpop.f32.mrb[0].mxu0
    %v951 = vadd.f32 %v855, %v950
    %v952 = vpop.f32.mrb[0].mxu0
    %953 = vmatprep.mubr.bf16.mxu0 %v289
    %954 = vmatmul.mubr.bf16.gmra.mrb[0].mxu0 %v288
    %v955 = vpop.f32.mrb[0].mxu0
    %v956 = vadd.f32 %v855, %v955
    %v957 = vpop.f32.mrb[0].mxu0
    %v958 = vpop.f32.mrb[0].mxu0
    %v959 = vadd.f32 %v855, %v958
    %v960 = vpop.f32.mrb[0].mxu0
    %961 = vmatprep.mubr.bf16.mxu0 %v291
    %962 = vmatmul.mubr.bf16.gmra.mrb[0].mxu0 %v290
    %v963 = vpop.f32.mrb[0].mxu0
    %v964 = vadd.f32 %v855, %v963
    %v965 = vpop.f32.mrb[0].mxu0
    %v966 = vpop.f32.mrb[0].mxu0
    %v967 = vadd.f32 %v855, %v966
    %v968 = vpop.f32.mrb[0].mxu0
    %969 = vmatprep.mubr.bf16.mxu0 %v293
    %970 = vmatmul.mubr.bf16.gmra.mrb[0].mxu0 %v292
    %v971 = vpop.f32.mrb[0].mxu0
    %v972 = vadd.f32 %v855, %v971
    %v973 = vpop.f32.mrb[0].mxu0
    %v974 = vpop.f32.mrb[0].mxu0
    %v975 = vadd.f32 %v855, %v974
    %v976 = vpop.f32.mrb[0].mxu0
    %977 = vmatprep.mubr.bf16.mxu0 %v295
    %978 = vmatmul.mubr.bf16.gmra.mrb[0].mxu0 %v294
    %v979 = vpop.f32.mrb[0].mxu0
    %v980 = vadd.f32 %v855, %v979
    %v981 = vpop.f32.mrb[0].mxu0
    %v982 = vpop.f32.mrb[0].mxu0
    %v983 = vadd.f32 %v855, %v982
    %v984 = vpop.f32.mrb[0].mxu0
    %985 = vmatprep.mubr.bf16.mxu0 %v297
    %986 = vmatmul.mubr.bf16.gmra.mrb[0].mxu0 %v296
    %v987 = vpop.f32.mrb[0].mxu0
    %v988 = vadd.f32 %v855, %v987
    %v989 = vpop.f32.mrb[0].mxu0
    %v990 = vpop.f32.mrb[0].mxu0
    %v991 = vadd.f32 %v855, %v990
    %v992 = vpop.f32.mrb[0].mxu0
    %993 = vmatprep.mubr.bf16.mxu0 %v299
    %994 = vmatmul.mubr.bf16.gmra.mrb[0].mxu0 %v298
    %v995 = vpop.f32.mrb[0].mxu0
    %v996 = vadd.f32 %v855, %v995
    %v997 = vpop.f32.mrb[0].mxu0
    %v998 = vpop.f32.mrb[0].mxu0
    %v999 = vadd.f32 %v855, %v998
    %v1000 = vpop.f32.mrb[0].mxu0
    %1001 = vmatprep.mubr.bf16.mxu0 %v301
    %1002 = vmatmul.mubr.bf16.gmra.mrb[0].mxu0 %v300
    %v1003 = vpop.f32.mrb[0].mxu0
    %v1004 = vadd.f32 %v855, %v1003
    %v1005 = vpop.f32.mrb[0].mxu0
    %v1006 = vpop.f32.mrb[0].mxu0
    %v1007 = vadd.f32 %v855, %v1006
    %v1008 = vpop.f32.mrb[0].mxu0
    %1009 = vmatprep.mubr.bf16.mxu0 %v303
    %1010 = vmatmul.mubr.bf16.gmra.mrb[0].mxu0 %v302
    %v1011 = vpop.f32.mrb[0].mxu0
    %v1012 = vadd.f32 %v855, %v1011
    %v1013 = vpop.f32.mrb[0].mxu0
    %v1014 = vpop.f32.mrb[0].mxu0
    %v1015 = vadd.f32 %v855, %v1014
    %v1016 = vpop.f32.mrb[0].mxu0
    %1017 = vdwg.mxu0
    %v1018 = vpack.c.bf16 %v895, %v892
    %v1019 = vpack.c.bf16 %v903, %v900
    %v1020 = vpack.c.bf16 %v911, %v908
    %v1021 = vpack.c.bf16 %v919, %v916
    %v1022 = vpack.c.bf16 %v927, %v924
    %v1023 = vpack.c.bf16 %v935, %v932
    %v1024 = vpack.c.bf16 %v943, %v940
    %v1025 = vpack.c.bf16 %v951, %v948
    %v1026 = vpack.c.bf16 %v959, %v956
    %v1027 = vpack.c.bf16 %v967, %v964
    %v1028 = vpack.c.bf16 %v975, %v972
    %v1029 = vpack.c.bf16 %v983, %v980
    %v1030 = vpack.c.bf16 %v991, %v988
    %v1031 = vpack.c.bf16 %v999, %v996
    %v1032 = vpack.c.bf16 %v1007, %v1004
    %v1033 = vpack.c.bf16 %v1015, %v1012
    %v1034 = vld [vmem:[#allocation8] sm:$0xf]
    %v1035 = vld [vmem:[#allocation8 + $0x4] sm:$0xf]
    %v1036 = vld [vmem:[#allocation8 + $0x8] sm:$0xf]
    %v1037 = vld [vmem:[#allocation8 + $0xc] sm:$0xf]
    %v1038 = vld [vmem:[#allocation8 + $0x10] sm:$0xf]
    %v1039 = vld [vmem:[#allocation8 + $0x14] sm:$0xf]
    %v1040 = vld [vmem:[#allocation8 + $0x18] sm:$0xf]
    %v1041 = vld [vmem:[#allocation8 + $0x1c] sm:$0xf]
    %v1042 = vld [vmem:[#allocation8 + $0x20] sm:$0xf]
    %v1043 = vld [vmem:[#allocation8 + $0x24] sm:$0xf]
    %v1044 = vld [vmem:[#allocation8 + $0x28] sm:$0xf]
    %v1045 = vld [vmem:[#allocation8 + $0x2c] sm:$0xf]
    %v1046 = vld [vmem:[#allocation8 + $0x30] sm:$0xf]
    %v1047 = vld [vmem:[#allocation8 + $0x34] sm:$0xf]
    %v1048 = vld [vmem:[#allocation8 + $0x38] sm:$0xf]
    %v1049 = vld [vmem:[#allocation8 + $0x3c] sm:$0xf]
    %v1066 = vunpack.c.l.b16 %v1034
    %v1067 = vunpack.c.l.b16 %v1035
    %v1068 = vunpack.c.l.b16 %v1036
    %v1069 = vunpack.c.l.b16 %v1037
    %v1070 = vunpack.c.l.b16 %v1038
    %v1071 = vunpack.c.l.b16 %v1039
    %v1072 = vunpack.c.l.b16 %v1040
    %v1073 = vunpack.c.l.b16 %v1041
    %v1074 = vunpack.c.l.b16 %v1042
    %v1075 = vunpack.c.l.b16 %v1043
    %v1076 = vunpack.c.l.b16 %v1044
    %v1077 = vunpack.c.l.b16 %v1045
    %v1078 = vunpack.c.l.b16 %v1046
    %v1079 = vunpack.c.l.b16 %v1047
    %v1080 = vunpack.c.l.b16 %v1048
    %v1081 = vunpack.c.l.b16 %v1049
    %v1082 = vpack.c.b16 %v1067, %v1066
    %v1083 = vpack.c.b16 %v1069, %v1068
    %v1084 = vpack.c.b16 %v1071, %v1070
    %v1085 = vpack.c.b16 %v1073, %v1072
    %v1086 = vpack.c.b16 %v1075, %v1074
    %v1087 = vpack.c.b16 %v1077, %v1076
    %v1088 = vpack.c.b16 %v1079, %v1078
    %v1089 = vpack.c.b16 %v1081, %v1080
    %1098 = vmatprep.subr.bf16.mxu0 0
    %1099 = vmatpush1.bf16.msra.mxu0 %v1082
    %1100 = vmatprep.subr.bf16.mxu0 0
    %1101 = vmatpush1.bf16.msra.mxu0 %v1083
    %1102 = vmatprep.subr.bf16.mxu0 0
    %1103 = vmatpush1.bf16.msra.mxu0 %v1084
    %1104 = vmatprep.subr.bf16.mxu0 0
    %1105 = vmatpush1.bf16.msra.mxu0 %v1085
    %1106 = vmatprep.subr.bf16.mxu0 0
    %1107 = vmatpush1.bf16.msra.mxu0 %v1086
    %1108 = vmatprep.subr.bf16.mxu0 0
    %1109 = vmatpush1.bf16.msra.mxu0 %v1087
    %1110 = vmatprep.subr.bf16.mxu0 0
    %1111 = vmatpush1.bf16.msra.mxu0 %v1088
    %1112 = vmatprep.subr.bf16.mxu0 0
    %1113 = vmatpush1.bf16.msra.mxu0 %v1089
    %1114 = vmatprep.subr.bf16.mxu0 0
    %1115 = vmatpush1.bf16.msra.mxu0 0
    %1116 = vmatprep.subr.bf16.mxu0 0
    %1117 = vmatpush1.bf16.msra.mxu0 0
    %1118 = vmatprep.subr.bf16.mxu0 0
    %1119 = vmatpush1.bf16.msra.mxu0 0
    %1120 = vmatprep.subr.bf16.mxu0 0
    %1121 = vmatpush1.bf16.msra.mxu0 0
    %1122 = vmatprep.subr.bf16.mxu0 0
    %1123 = vmatpush1.bf16.msra.mxu0 0
    %1124 = vmatprep.subr.bf16.mxu0 0
    %1125 = vmatpush1.bf16.msra.mxu0 0
    %1126 = vmatprep.subr.bf16.mxu0 0
    %1127 = vmatpush1.bf16.msra.mxu0 0
    %1128 = vmatprep.subr.bf16.mxu0 0
    %1129 = vmatpush1.bf16.msra.mxu0 0
    %1130 = vmatprep.mubr.bf16.mxu0 0
    %1131 = vmatmul.mubr.bf16.gmra.mrb[0].mxu0 %v1018
    %v1132 = vpop.f32.mrb[0].mxu0
    %v1133 = vadd.f32 0.0, %v1132
    %v1134 = vpop.f32.mrb[0].mxu0
    %v1135 = vpop.f32.mrb[0].mxu0
    %v1136 = vadd.f32 0.0, %v1135
    %v1137 = vpop.f32.mrb[0].mxu0
    %1138 = vmatprep.mubr.bf16.mxu0 0
    %1139 = vmatmul.mubr.bf16.gmra.mrb[0].mxu0 %v1019
    %v1140 = vpop.f32.mrb[0].mxu0
    %v1141 = vadd.f32 0.0, %v1140
    %v1142 = vpop.f32.mrb[0].mxu0
    %v1143 = vpop.f32.mrb[0].mxu0
    %v1144 = vadd.f32 0.0, %v1143
    %v1145 = vpop.f32.mrb[0].mxu0
    %1146 = vmatprep.mubr.bf16.mxu0 0
    %1147 = vmatmul.mubr.bf16.gmra.mrb[0].mxu0 %v1020
    %v1148 = vpop.f32.mrb[0].mxu0
    %v1149 = vadd.f32 0.0, %v1148
    %v1150 = vpop.f32.mrb[0].mxu0
    %v1151 = vpop.f32.mrb[0].mxu0
    %v1152 = vadd.f32 0.0, %v1151
    %v1153 = vpop.f32.mrb[0].mxu0
    %1154 = vmatprep.mubr.bf16.mxu0 0
    %1155 = vmatmul.mubr.bf16.gmra.mrb[0].mxu0 %v1021
    %v1156 = vpop.f32.mrb[0].mxu0
    %v1157 = vadd.f32 0.0, %v1156
    %v1158 = vpop.f32.mrb[0].mxu0
    %v1159 = vpop.f32.mrb[0].mxu0
    %v1160 = vadd.f32 0.0, %v1159
    %v1161 = vpop.f32.mrb[0].mxu0
    %1162 = vmatprep.mubr.bf16.mxu0 0
    %1163 = vmatmul.mubr.bf16.gmra.mrb[0].mxu0 %v1022
    %v1164 = vpop.f32.mrb[0].mxu0
    %v1165 = vadd.f32 0.0, %v1164
    %v1166 = vpop.f32.mrb[0].mxu0
    %v1167 = vpop.f32.mrb[0].mxu0
    %v1168 = vadd.f32 0.0, %v1167
    %v1169 = vpop.f32.mrb[0].mxu0
    %1170 = vmatprep.mubr.bf16.mxu0 0
    %1171 = vmatmul.mubr.bf16.gmra.mrb[0].mxu0 %v1023
    %v1172 = vpop.f32.mrb[0].mxu0
    %v1173 = vadd.f32 0.0, %v1172
    %v1174 = vpop.f32.mrb[0].mxu0
    %v1175 = vpop.f32.mrb[0].mxu0
    %v1176 = vadd.f32 0.0, %v1175
    %v1177 = vpop.f32.mrb[0].mxu0
    %1178 = vmatprep.mubr.bf16.mxu0 0
    %1179 = vmatmul.mubr.bf16.gmra.mrb[0].mxu0 %v1024
    %v1180 = vpop.f32.mrb[0].mxu0
    %v1181 = vadd.f32 0.0, %v1180
    %v1182 = vpop.f32.mrb[0].mxu0
    %v1183 = vpop.f32.mrb[0].mxu0
    %v1184 = vadd.f32 0.0, %v1183
    %v1185 = vpop.f32.mrb[0].mxu0
    %1186 = vmatprep.mubr.bf16.mxu0 0
    %1187 = vmatmul.mubr.bf16.gmra.mrb[0].mxu0 %v1025
    %v1188 = vpop.f32.mrb[0].mxu0
    %v1189 = vadd.f32 0.0, %v1188
    %v1190 = vpop.f32.mrb[0].mxu0
    %v1191 = vpop.f32.mrb[0].mxu0
    %v1192 = vadd.f32 0.0, %v1191
    %v1193 = vpop.f32.mrb[0].mxu0
    %1194 = vmatprep.mubr.bf16.mxu0 0
    %1195 = vmatmul.mubr.bf16.gmra.mrb[0].mxu0 %v1026
    %v1196 = vpop.f32.mrb[0].mxu0
    %v1197 = vadd.f32 0.0, %v1196
    %v1198 = vpop.f32.mrb[0].mxu0
    %v1199 = vpop.f32.mrb[0].mxu0
    %v1200 = vadd.f32 0.0, %v1199
    %v1201 = vpop.f32.mrb[0].mxu0
    %1202 = vmatprep.mubr.bf16.mxu0 0
    %1203 = vmatmul.mubr.bf16.gmra.mrb[0].mxu0 %v1027
    %v1204 = vpop.f32.mrb[0].mxu0
    %v1205 = vadd.f32 0.0, %v1204
    %v1206 = vpop.f32.mrb[0].mxu0
    %v1207 = vpop.f32.mrb[0].mxu0
    %v1208 = vadd.f32 0.0, %v1207
    %v1209 = vpop.f32.mrb[0].mxu0
    %1210 = vmatprep.mubr.bf16.mxu0 0
    %1211 = vmatmul.mubr.bf16.gmra.mrb[0].mxu0 %v1028
    %v1212 = vpop.f32.mrb[0].mxu0
    %v1213 = vadd.f32 0.0, %v1212
    %v1214 = vpop.f32.mrb[0].mxu0
    %v1215 = vpop.f32.mrb[0].mxu0
    %v1216 = vadd.f32 0.0, %v1215
    %v1217 = vpop.f32.mrb[0].mxu0
    %1218 = vmatprep.mubr.bf16.mxu0 0
    %1219 = vmatmul.mubr.bf16.gmra.mrb[0].mxu0 %v1029
    %v1220 = vpop.f32.mrb[0].mxu0
    %v1221 = vadd.f32 0.0, %v1220
    %v1222 = vpop.f32.mrb[0].mxu0
    %v1223 = vpop.f32.mrb[0].mxu0
    %v1224 = vadd.f32 0.0, %v1223
    %v1225 = vpop.f32.mrb[0].mxu0
    %1226 = vmatprep.mubr.bf16.mxu0 0
    %1227 = vmatmul.mubr.bf16.gmra.mrb[0].mxu0 %v1030
    %v1228 = vpop.f32.mrb[0].mxu0
    %v1229 = vadd.f32 0.0, %v1228
    %v1230 = vpop.f32.mrb[0].mxu0
    %v1231 = vpop.f32.mrb[0].mxu0
    %v1232 = vadd.f32 0.0, %v1231
    %v1233 = vpop.f32.mrb[0].mxu0
    %1234 = vmatprep.mubr.bf16.mxu0 0
    %1235 = vmatmul.mubr.bf16.gmra.mrb[0].mxu0 %v1031
    %v1236 = vpop.f32.mrb[0].mxu0
    %v1237 = vadd.f32 0.0, %v1236
    %v1238 = vpop.f32.mrb[0].mxu0
    %v1239 = vpop.f32.mrb[0].mxu0
    %v1240 = vadd.f32 0.0, %v1239
    %v1241 = vpop.f32.mrb[0].mxu0
    %1242 = vmatprep.mubr.bf16.mxu0 0
    %1243 = vmatmul.mubr.bf16.gmra.mrb[0].mxu0 %v1032
    %v1244 = vpop.f32.mrb[0].mxu0
    %v1245 = vadd.f32 0.0, %v1244
    %v1246 = vpop.f32.mrb[0].mxu0
    %v1247 = vpop.f32.mrb[0].mxu0
    %v1248 = vadd.f32 0.0, %v1247
    %v1249 = vpop.f32.mrb[0].mxu0
    %1250 = vmatprep.mubr.bf16.mxu0 0
    %1251 = vmatmul.mubr.bf16.gmra.mrb[0].mxu0 %v1033
    %v1252 = vpop.f32.mrb[0].mxu0
    %v1253 = vadd.f32 0.0, %v1252
    %v1254 = vpop.f32.mrb[0].mxu0
    %v1255 = vpop.f32.mrb[0].mxu0
    %v1256 = vadd.f32 0.0, %v1255
    %v1257 = vpop.f32.mrb[0].mxu0
    %1258 = vdwg.mxu0
    %v1259 = vpack.c.bf16 %v1136, %v1133
    %v1260 = vpack.c.bf16 %v1144, %v1141
    %v1261 = vpack.c.bf16 %v1152, %v1149
    %v1262 = vpack.c.bf16 %v1160, %v1157
    %v1263 = vpack.c.bf16 %v1168, %v1165
    %v1264 = vpack.c.bf16 %v1176, %v1173
    %v1265 = vpack.c.bf16 %v1184, %v1181
    %v1266 = vpack.c.bf16 %v1192, %v1189
    %v1267 = vpack.c.bf16 %v1200, %v1197
    %v1268 = vpack.c.bf16 %v1208, %v1205
    %v1269 = vpack.c.bf16 %v1216, %v1213
    %v1270 = vpack.c.bf16 %v1224, %v1221
    %v1271 = vpack.c.bf16 %v1232, %v1229
    %v1272 = vpack.c.bf16 %v1240, %v1237
    %v1273 = vpack.c.bf16 %v1248, %v1245
    %v1274 = vpack.c.bf16 %v1256, %v1253
    %v1275 = vld [vmem:[%s4] sm:$0x1]
    %v1277 = vlaneseq
    %v1278 = vshrl.u32 %v1277, 7
    %v1279 = vsub.s32 0, %v1278
    %v1280 = vrot.slane %v1275, %v1279
    %1282 = vmatprep.subr.bf16.mxu0 0
    %1283 = vmatpush1.bf16.msra.mxu0 %v1259
    %1284 = vmatprep.subr.bf16.mxu0 0
    %1285 = vmatpush1.bf16.msra.mxu0 %v1260
    %1286 = vmatprep.subr.bf16.mxu0 0
    %1287 = vmatpush1.bf16.msra.mxu0 %v1261
    %1288 = vmatprep.subr.bf16.mxu0 0
    %1289 = vmatpush1.bf16.msra.mxu0 %v1262
    %1290 = vmatprep.subr.bf16.mxu0 0
    %1291 = vmatpush1.bf16.msra.mxu0 %v1263
    %1292 = vmatprep.subr.bf16.mxu0 0
    %1293 = vmatpush1.bf16.msra.mxu0 %v1264
    %1294 = vmatprep.subr.bf16.mxu0 0
    %1295 = vmatpush1.bf16.msra.mxu0 %v1265
    %1296 = vmatprep.subr.bf16.mxu0 0
    %1297 = vmatpush1.bf16.msra.mxu0 %v1266
    %1298 = vmatprep.subr.bf16.mxu0 0
    %1299 = vmatpush1.bf16.msra.mxu0 %v1267
    %1300 = vmatprep.subr.bf16.mxu0 0
    %1301 = vmatpush1.bf16.msra.mxu0 %v1268
    %1302 = vmatprep.subr.bf16.mxu0 0
    %1303 = vmatpush1.bf16.msra.mxu0 %v1269
    %1304 = vmatprep.subr.bf16.mxu0 0
    %1305 = vmatpush1.bf16.msra.mxu0 %v1270
    %1306 = vmatprep.subr.bf16.mxu0 0
    %1307 = vmatpush1.bf16.msra.mxu0 %v1271
    %1308 = vmatprep.subr.bf16.mxu0 0
    %1309 = vmatpush1.bf16.msra.mxu0 %v1272
    %1310 = vmatprep.subr.bf16.mxu0 0
    %1311 = vmatpush1.bf16.msra.mxu0 %v1273
    %1312 = vmatprep.subr.bf16.mxu0 0
    %1313 = vmatpush1.bf16.msra.mxu0 %v1274
    %1314 = vmatprep.mubr.bf16.mxu0 %v273
    %1315 = vmatmul.mubr.bf16.gmra.mrb[0].mxu0 %v272
    %v1316 = vpop.f32.mrb[0].mxu0
    %v1317 = vadd.f32 %v1280, %v1316
    %v1318 = vpop.f32.mrb[0].mxu0
    %v1319 = vpop.f32.mrb[0].mxu0
    %v1320 = vadd.f32 %v1280, %v1319
    %v1321 = vpop.f32.mrb[0].mxu0
    %1322 = vmatprep.mubr.bf16.mxu0 %v275
    %1323 = vmatmul.mubr.bf16.gmra.mrb[0].mxu0 %v274
    %v1324 = vpop.f32.mrb[0].mxu0
    %v1325 = vadd.f32 %v1280, %v1324
    %v1326 = vpop.f32.mrb[0].mxu0
    %v1327 = vpop.f32.mrb[0].mxu0
    %v1328 = vadd.f32 %v1280, %v1327
    %v1329 = vpop.f32.mrb[0].mxu0
    %1330 = vmatprep.mubr.bf16.mxu0 %v277
    %1331 = vmatmul.mubr.bf16.gmra.mrb[0].mxu0 %v276
    %v1332 = vpop.f32.mrb[0].mxu0
    %v1333 = vadd.f32 %v1280, %v1332
    %v1334 = vpop.f32.mrb[0].mxu0
    %v1335 = vpop.f32.mrb[0].mxu0
    %v1336 = vadd.f32 %v1280, %v1335
    %v1337 = vpop.f32.mrb[0].mxu0
    %1338 = vmatprep.mubr.bf16.mxu0 %v279
    %1339 = vmatmul.mubr.bf16.gmra.mrb[0].mxu0 %v278
    %v1340 = vpop.f32.mrb[0].mxu0
    %v1341 = vadd.f32 %v1280, %v1340
    %v1342 = vpop.f32.mrb[0].mxu0
    %v1343 = vpop.f32.mrb[0].mxu0
    %v1344 = vadd.f32 %v1280, %v1343
    %v1345 = vpop.f32.mrb[0].mxu0
    %1346 = vmatprep.mubr.bf16.mxu0 %v281
    %1347 = vmatmul.mubr.bf16.gmra.mrb[0].mxu0 %v280
    %v1348 = vpop.f32.mrb[0].mxu0
    %v1349 = vadd.f32 %v1280, %v1348
    %v1350 = vpop.f32.mrb[0].mxu0
    %v1351 = vpop.f32.mrb[0].mxu0
    %v1352 = vadd.f32 %v1280, %v1351
    %v1353 = vpop.f32.mrb[0].mxu0
    %1354 = vmatprep.mubr.bf16.mxu0 %v283
    %1355 = vmatmul.mubr.bf16.gmra.mrb[0].mxu0 %v282
    %v1356 = vpop.f32.mrb[0].mxu0
    %v1357 = vadd.f32 %v1280, %v1356
    %v1358 = vpop.f32.mrb[0].mxu0
    %v1359 = vpop.f32.mrb[0].mxu0
    %v1360 = vadd.f32 %v1280, %v1359
    %v1361 = vpop.f32.mrb[0].mxu0
    %1362 = vmatprep.mubr.bf16.mxu0 %v285
    %1363 = vmatmul.mubr.bf16.gmra.mrb[0].mxu0 %v284
    %v1364 = vpop.f32.mrb[0].mxu0
    %v1365 = vadd.f32 %v1280, %v1364
    %v1366 = vpop.f32.mrb[0].mxu0
    %v1367 = vpop.f32.mrb[0].mxu0
    %v1368 = vadd.f32 %v1280, %v1367
    %v1369 = vpop.f32.mrb[0].mxu0
    %1370 = vmatprep.mubr.bf16.mxu0 %v287
    %1371 = vmatmul.mubr.bf16.gmra.mrb[0].mxu0 %v286
    %v1372 = vpop.f32.mrb[0].mxu0
    %v1373 = vadd.f32 %v1280, %v1372
    %v1374 = vpop.f32.mrb[0].mxu0
    %v1375 = vpop.f32.mrb[0].mxu0
    %v1376 = vadd.f32 %v1280, %v1375
    %v1377 = vpop.f32.mrb[0].mxu0
    %1378 = vmatprep.mubr.bf16.mxu0 %v289
    %1379 = vmatmul.mubr.bf16.gmra.mrb[0].mxu0 %v288
    %v1380 = vpop.f32.mrb[0].mxu0
    %v1381 = vadd.f32 %v1280, %v1380
    %v1382 = vpop.f32.mrb[0].mxu0
    %v1383 = vpop.f32.mrb[0].mxu0
    %v1384 = vadd.f32 %v1280, %v1383
    %v1385 = vpop.f32.mrb[0].mxu0
    %1386 = vmatprep.mubr.bf16.mxu0 %v291
    %1387 = vmatmul.mubr.bf16.gmra.mrb[0].mxu0 %v290
    %v1388 = vpop.f32.mrb[0].mxu0
    %v1389 = vadd.f32 %v1280, %v1388
    %v1390 = vpop.f32.mrb[0].mxu0
    %v1391 = vpop.f32.mrb[0].mxu0
    %v1392 = vadd.f32 %v1280, %v1391
    %v1393 = vpop.f32.mrb[0].mxu0
    %1394 = vmatprep.mubr.bf16.mxu0 %v293
    %1395 = vmatmul.mubr.bf16.gmra.mrb[0].mxu0 %v292
    %v1396 = vpop.f32.mrb[0].mxu0
    %v1397 = vadd.f32 %v1280, %v1396
    %v1398 = vpop.f32.mrb[0].mxu0
    %v1399 = vpop.f32.mrb[0].mxu0
    %v1400 = vadd.f32 %v1280, %v1399
    %v1401 = vpop.f32.mrb[0].mxu0
    %1402 = vmatprep.mubr.bf16.mxu0 %v295
    %1403 = vmatmul.mubr.bf16.gmra.mrb[0].mxu0 %v294
    %v1404 = vpop.f32.mrb[0].mxu0
    %v1405 = vadd.f32 %v1280, %v1404
    %v1406 = vpop.f32.mrb[0].mxu0
    %v1407 = vpop.f32.mrb[0].mxu0
    %v1408 = vadd.f32 %v1280, %v1407
    %v1409 = vpop.f32.mrb[0].mxu0
    %1410 = vmatprep.mubr.bf16.mxu0 %v297
    %1411 = vmatmul.mubr.bf16.gmra.mrb[0].mxu0 %v296
    %v1412 = vpop.f32.mrb[0].mxu0
    %v1413 = vadd.f32 %v1280, %v1412
    %v1414 = vpop.f32.mrb[0].mxu0
    %v1415 = vpop.f32.mrb[0].mxu0
    %v1416 = vadd.f32 %v1280, %v1415
    %v1417 = vpop.f32.mrb[0].mxu0
    %1418 = vmatprep.mubr.bf16.mxu0 %v299
    %1419 = vmatmul.mubr.bf16.gmra.mrb[0].mxu0 %v298
    %v1420 = vpop.f32.mrb[0].mxu0
    %v1421 = vadd.f32 %v1280, %v1420
    %v1422 = vpop.f32.mrb[0].mxu0
    %v1423 = vpop.f32.mrb[0].mxu0
    %v1424 = vadd.f32 %v1280, %v1423
    %v1425 = vpop.f32.mrb[0].mxu0
    %1426 = vmatprep.mubr.bf16.mxu0 %v301
    %1427 = vmatmul.mubr.bf16.gmra.mrb[0].mxu0 %v300
    %v1428 = vpop.f32.mrb[0].mxu0
    %v1429 = vadd.f32 %v1280, %v1428
    %v1430 = vpop.f32.mrb[0].mxu0
    %v1431 = vpop.f32.mrb[0].mxu0
    %v1432 = vadd.f32 %v1280, %v1431
    %v1433 = vpop.f32.mrb[0].mxu0
    %1434 = vmatprep.mubr.bf16.mxu0 %v303
    %1435 = vmatmul.mubr.bf16.gmra.mrb[0].mxu0 %v302
    %v1436 = vpop.f32.mrb[0].mxu0
    %v1437 = vadd.f32 %v1280, %v1436
    %v1438 = vpop.f32.mrb[0].mxu0
    %v1439 = vpop.f32.mrb[0].mxu0
    %v1440 = vadd.f32 %v1280, %v1439
    %v1441 = vpop.f32.mrb[0].mxu0
    %1442 = vdwg.mxu0
    %v1443 = vpack.c.bf16 %v1320, %v1317
    %v1444 = vpack.c.bf16 %v1328, %v1325
    %v1445 = vpack.c.bf16 %v1336, %v1333
    %v1446 = vpack.c.bf16 %v1344, %v1341
    %v1447 = vpack.c.bf16 %v1352, %v1349
    %v1448 = vpack.c.bf16 %v1360, %v1357
    %v1449 = vpack.c.bf16 %v1368, %v1365
    %v1450 = vpack.c.bf16 %v1376, %v1373
    %v1451 = vpack.c.bf16 %v1384, %v1381
    %v1452 = vpack.c.bf16 %v1392, %v1389
    %v1453 = vpack.c.bf16 %v1400, %v1397
    %v1454 = vpack.c.bf16 %v1408, %v1405
    %v1455 = vpack.c.bf16 %v1416, %v1413
    %v1456 = vpack.c.bf16 %v1424, %v1421
    %v1457 = vpack.c.bf16 %v1432, %v1429
    %v1458 = vpack.c.bf16 %v1440, %v1437
    %v1459 = vld [vmem:[#allocation10] sm:$0xf]
    %v1460 = vld [vmem:[#allocation10 + $0x4] sm:$0xf]
    %v1461 = vld [vmem:[#allocation10 + $0x8] sm:$0xf]
    %v1462 = vld [vmem:[#allocation10 + $0xc] sm:$0xf]
    %v1463 = vld [vmem:[#allocation10 + $0x10] sm:$0xf]
    %v1464 = vld [vmem:[#allocation10 + $0x14] sm:$0xf]
    %v1465 = vld [vmem:[#allocation10 + $0x18] sm:$0xf]
    %v1466 = vld [vmem:[#allocation10 + $0x1c] sm:$0xf]
    %v1467 = vld [vmem:[#allocation10 + $0x20] sm:$0xf]
    %v1468 = vld [vmem:[#allocation10 + $0x24] sm:$0xf]
    %v1469 = vld [vmem:[#allocation10 + $0x28] sm:$0xf]
    %v1470 = vld [vmem:[#allocation10 + $0x2c] sm:$0xf]
    %v1471 = vld [vmem:[#allocation10 + $0x30] sm:$0xf]
    %v1472 = vld [vmem:[#allocation10 + $0x34] sm:$0xf]
    %v1473 = vld [vmem:[#allocation10 + $0x38] sm:$0xf]
    %v1474 = vld [vmem:[#allocation10 + $0x3c] sm:$0xf]
    %v1491 = vunpack.c.l.b16 %v1459
    %v1492 = vunpack.c.l.b16 %v1460
    %v1493 = vunpack.c.l.b16 %v1461
    %v1494 = vunpack.c.l.b16 %v1462
    %v1495 = vunpack.c.l.b16 %v1463
    %v1496 = vunpack.c.l.b16 %v1464
    %v1497 = vunpack.c.l.b16 %v1465
    %v1498 = vunpack.c.l.b16 %v1466
    %v1499 = vunpack.c.l.b16 %v1467
    %v1500 = vunpack.c.l.b16 %v1468
    %v1501 = vunpack.c.l.b16 %v1469
    %v1502 = vunpack.c.l.b16 %v1470
    %v1503 = vunpack.c.l.b16 %v1471
    %v1504 = vunpack.c.l.b16 %v1472
    %v1505 = vunpack.c.l.b16 %v1473
    %v1506 = vunpack.c.l.b16 %v1474
    %v1507 = vpack.c.b16 %v1492, %v1491
    %v1508 = vpack.c.b16 %v1494, %v1493
    %v1509 = vpack.c.b16 %v1496, %v1495
    %v1510 = vpack.c.b16 %v1498, %v1497
    %v1511 = vpack.c.b16 %v1500, %v1499
    %v1512 = vpack.c.b16 %v1502, %v1501
    %v1513 = vpack.c.b16 %v1504, %v1503
    %v1514 = vpack.c.b16 %v1506, %v1505
    %1523 = vmatprep.subr.bf16.mxu0 0
    %1524 = vmatpush1.bf16.msra.mxu0 %v1507
    %1525 = vmatprep.subr.bf16.mxu0 0
    %1526 = vmatpush1.bf16.msra.mxu0 %v1508
    %1527 = vmatprep.subr.bf16.mxu0 0
    %1528 = vmatpush1.bf16.msra.mxu0 %v1509
    %1529 = vmatprep.subr.bf16.mxu0 0
    %1530 = vmatpush1.bf16.msra.mxu0 %v1510
    %1531 = vmatprep.subr.bf16.mxu0 0
    %1532 = vmatpush1.bf16.msra.mxu0 %v1511
    %1533 = vmatprep.subr.bf16.mxu0 0
    %1534 = vmatpush1.bf16.msra.mxu0 %v1512
    %1535 = vmatprep.subr.bf16.mxu0 0
    %1536 = vmatpush1.bf16.msra.mxu0 %v1513
    %1537 = vmatprep.subr.bf16.mxu0 0
    %1538 = vmatpush1.bf16.msra.mxu0 %v1514
    %1539 = vmatprep.subr.bf16.mxu0 0
    %1540 = vmatpush1.bf16.msra.mxu0 0
    %1541 = vmatprep.subr.bf16.mxu0 0
    %1542 = vmatpush1.bf16.msra.mxu0 0
    %1543 = vmatprep.subr.bf16.mxu0 0
    %1544 = vmatpush1.bf16.msra.mxu0 0
    %1545 = vmatprep.subr.bf16.mxu0 0
    %1546 = vmatpush1.bf16.msra.mxu0 0
    %1547 = vmatprep.subr.bf16.mxu0 0
    %1548 = vmatpush1.bf16.msra.mxu0 0
    %1549 = vmatprep.subr.bf16.mxu0 0
    %1550 = vmatpush1.bf16.msra.mxu0 0
    %1551 = vmatprep.subr.bf16.mxu0 0
    %1552 = vmatpush1.bf16.msra.mxu0 0
    %1553 = vmatprep.subr.bf16.mxu0 0
    %1554 = vmatpush1.bf16.msra.mxu0 0
    %1555 = vmatprep.mubr.bf16.mxu0 0
    %1556 = vmatmul.mubr.bf16.gmra.mrb[0].mxu0 %v1443
    %v1557 = vpop.f32.mrb[0].mxu0
    %v1558 = vadd.f32 0.0, %v1557
    %v1559 = vpop.f32.mrb[0].mxu0
    %v1560 = vpop.f32.mrb[0].mxu0
    %v1561 = vadd.f32 0.0, %v1560
    %v1562 = vpop.f32.mrb[0].mxu0
    %1563 = vmatprep.mubr.bf16.mxu0 0
    %1564 = vmatmul.mubr.bf16.gmra.mrb[0].mxu0 %v1444
    %v1565 = vpop.f32.mrb[0].mxu0
    %v1566 = vadd.f32 0.0, %v1565
    %v1567 = vpop.f32.mrb[0].mxu0
    %v1568 = vpop.f32.mrb[0].mxu0
    %v1569 = vadd.f32 0.0, %v1568
    %v1570 = vpop.f32.mrb[0].mxu0
    %1571 = vmatprep.mubr.bf16.mxu0 0
    %1572 = vmatmul.mubr.bf16.gmra.mrb[0].mxu0 %v1445
    %v1573 = vpop.f32.mrb[0].mxu0
    %v1574 = vadd.f32 0.0, %v1573
    %v1575 = vpop.f32.mrb[0].mxu0
    %v1576 = vpop.f32.mrb[0].mxu0
    %v1577 = vadd.f32 0.0, %v1576
    %v1578 = vpop.f32.mrb[0].mxu0
    %1579 = vmatprep.mubr.bf16.mxu0 0
    %1580 = vmatmul.mubr.bf16.gmra.mrb[0].mxu0 %v1446
    %v1581 = vpop.f32.mrb[0].mxu0
    %v1582 = vadd.f32 0.0, %v1581
    %v1583 = vpop.f32.mrb[0].mxu0
    %v1584 = vpop.f32.mrb[0].mxu0
    %v1585 = vadd.f32 0.0, %v1584
    %v1586 = vpop.f32.mrb[0].mxu0
    %1587 = vmatprep.mubr.bf16.mxu0 0
    %1588 = vmatmul.mubr.bf16.gmra.mrb[0].mxu0 %v1447
    %v1589 = vpop.f32.mrb[0].mxu0
    %v1590 = vadd.f32 0.0, %v1589
    %v1591 = vpop.f32.mrb[0].mxu0
    %v1592 = vpop.f32.mrb[0].mxu0
    %v1593 = vadd.f32 0.0, %v1592
    %v1594 = vpop.f32.mrb[0].mxu0
    %1595 = vmatprep.mubr.bf16.mxu0 0
    %1596 = vmatmul.mubr.bf16.gmra.mrb[0].mxu0 %v1448
    %v1597 = vpop.f32.mrb[0].mxu0
    %v1598 = vadd.f32 0.0, %v1597
    %v1599 = vpop.f32.mrb[0].mxu0
    %v1600 = vpop.f32.mrb[0].mxu0
    %v1601 = vadd.f32 0.0, %v1600
    %v1602 = vpop.f32.mrb[0].mxu0
    %1603 = vmatprep.mubr.bf16.mxu0 0
    %1604 = vmatmul.mubr.bf16.gmra.mrb[0].mxu0 %v1449
    %v1605 = vpop.f32.mrb[0].mxu0
    %v1606 = vadd.f32 0.0, %v1605
    %v1607 = vpop.f32.mrb[0].mxu0
    %v1608 = vpop.f32.mrb[0].mxu0
    %v1609 = vadd.f32 0.0, %v1608
    %v1610 = vpop.f32.mrb[0].mxu0
    %1611 = vmatprep.mubr.bf16.mxu0 0
    %1612 = vmatmul.mubr.bf16.gmra.mrb[0].mxu0 %v1450
    %v1613 = vpop.f32.mrb[0].mxu0
    %v1614 = vadd.f32 0.0, %v1613
    %v1615 = vpop.f32.mrb[0].mxu0
    %v1616 = vpop.f32.mrb[0].mxu0
    %v1617 = vadd.f32 0.0, %v1616
    %v1618 = vpop.f32.mrb[0].mxu0
    %1619 = vmatprep.mubr.bf16.mxu0 0
    %1620 = vmatmul.mubr.bf16.gmra.mrb[0].mxu0 %v1451
    %v1621 = vpop.f32.mrb[0].mxu0
    %v1622 = vadd.f32 0.0, %v1621
    %v1623 = vpop.f32.mrb[0].mxu0
    %v1624 = vpop.f32.mrb[0].mxu0
    %v1625 = vadd.f32 0.0, %v1624
    %v1626 = vpop.f32.mrb[0].mxu0
    %1627 = vmatprep.mubr.bf16.mxu0 0
    %1628 = vmatmul.mubr.bf16.gmra.mrb[0].mxu0 %v1452
    %v1629 = vpop.f32.mrb[0].mxu0
    %v1630 = vadd.f32 0.0, %v1629
    %v1631 = vpop.f32.mrb[0].mxu0
    %v1632 = vpop.f32.mrb[0].mxu0
    %v1633 = vadd.f32 0.0, %v1632
    %v1634 = vpop.f32.mrb[0].mxu0
    %1635 = vmatprep.mubr.bf16.mxu0 0
    %1636 = vmatmul.mubr.bf16.gmra.mrb[0].mxu0 %v1453
    %v1637 = vpop.f32.mrb[0].mxu0
    %v1638 = vadd.f32 0.0, %v1637
    %v1639 = vpop.f32.mrb[0].mxu0
    %v1640 = vpop.f32.mrb[0].mxu0
    %v1641 = vadd.f32 0.0, %v1640
    %v1642 = vpop.f32.mrb[0].mxu0
    %1643 = vmatprep.mubr.bf16.mxu0 0
    %1644 = vmatmul.mubr.bf16.gmra.mrb[0].mxu0 %v1454
    %v1645 = vpop.f32.mrb[0].mxu0
    %v1646 = vadd.f32 0.0, %v1645
    %v1647 = vpop.f32.mrb[0].mxu0
    %v1648 = vpop.f32.mrb[0].mxu0
    %v1649 = vadd.f32 0.0, %v1648
    %v1650 = vpop.f32.mrb[0].mxu0
    %1651 = vmatprep.mubr.bf16.mxu0 0
    %1652 = vmatmul.mubr.bf16.gmra.mrb[0].mxu0 %v1455
    %v1653 = vpop.f32.mrb[0].mxu0
    %v1654 = vadd.f32 0.0, %v1653
    %v1655 = vpop.f32.mrb[0].mxu0
    %v1656 = vpop.f32.mrb[0].mxu0
    %v1657 = vadd.f32 0.0, %v1656
    %v1658 = vpop.f32.mrb[0].mxu0
    %1659 = vmatprep.mubr.bf16.mxu0 0
    %1660 = vmatmul.mubr.bf16.gmra.mrb[0].mxu0 %v1456
    %v1661 = vpop.f32.mrb[0].mxu0
    %v1662 = vadd.f32 0.0, %v1661
    %v1663 = vpop.f32.mrb[0].mxu0
    %v1664 = vpop.f32.mrb[0].mxu0
    %v1665 = vadd.f32 0.0, %v1664
    %v1666 = vpop.f32.mrb[0].mxu0
    %1667 = vmatprep.mubr.bf16.mxu0 0
    %1668 = vmatmul.mubr.bf16.gmra.mrb[0].mxu0 %v1457
    %v1669 = vpop.f32.mrb[0].mxu0
    %v1670 = vadd.f32 0.0, %v1669
    %v1671 = vpop.f32.mrb[0].mxu0
    %v1672 = vpop.f32.mrb[0].mxu0
    %v1673 = vadd.f32 0.0, %v1672
    %v1674 = vpop.f32.mrb[0].mxu0
    %1675 = vmatprep.mubr.bf16.mxu0 0
    %1676 = vmatmul.mubr.bf16.gmra.mrb[0].mxu0 %v1458
    %v1677 = vpop.f32.mrb[0].mxu0
    %v1678 = vadd.f32 0.0, %v1677
    %v1679 = vpop.f32.mrb[0].mxu0
    %v1680 = vpop.f32.mrb[0].mxu0
    %v1681 = vadd.f32 0.0, %v1680
    %v1682 = vpop.f32.mrb[0].mxu0
    %1683 = vdwg.mxu0
    %v1684 = vpack.c.bf16 %v1561, %v1558
    %v1685 = vpack.c.bf16 %v1569, %v1566
    %v1686 = vpack.c.bf16 %v1577, %v1574
    %v1687 = vpack.c.bf16 %v1585, %v1582
    %v1688 = vpack.c.bf16 %v1593, %v1590
    %v1689 = vpack.c.bf16 %v1601, %v1598
    %v1690 = vpack.c.bf16 %v1609, %v1606
    %v1691 = vpack.c.bf16 %v1617, %v1614
    %v1692 = vpack.c.bf16 %v1625, %v1622
    %v1693 = vpack.c.bf16 %v1633, %v1630
    %v1694 = vpack.c.bf16 %v1641, %v1638
    %v1695 = vpack.c.bf16 %v1649, %v1646
    %v1696 = vpack.c.bf16 %v1657, %v1654
    %v1697 = vpack.c.bf16 %v1665, %v1662
    %v1698 = vpack.c.bf16 %v1673, %v1670
    %v1699 = vpack.c.bf16 %v1681, %v1678
    %v1700 = vld [vmem:[%s5] sm:$0x1]
    %v1702 = vlaneseq
    %v1703 = vshrl.u32 %v1702, 7
    %v1704 = vsub.s32 0, %v1703
    %v1705 = vrot.slane %v1700, %v1704
    %1707 = vmatprep.subr.bf16.mxu0 0
    %1708 = vmatpush1.bf16.msra.mxu0 %v1684
    %1709 = vmatprep.subr.bf16.mxu0 0
    %1710 = vmatpush1.bf16.msra.mxu0 %v1685
    %1711 = vmatprep.subr.bf16.mxu0 0
    %1712 = vmatpush1.bf16.msra.mxu0 %v1686
    %1713 = vmatprep.subr.bf16.mxu0 0
    %1714 = vmatpush1.bf16.msra.mxu0 %v1687
    %1715 = vmatprep.subr.bf16.mxu0 0
    %1716 = vmatpush1.bf16.msra.mxu0 %v1688
    %1717 = vmatprep.subr.bf16.mxu0 0
    %1718 = vmatpush1.bf16.msra.mxu0 %v1689
    %1719 = vmatprep.subr.bf16.mxu0 0
    %1720 = vmatpush1.bf16.msra.mxu0 %v1690
    %1721 = vmatprep.subr.bf16.mxu0 0
    %1722 = vmatpush1.bf16.msra.mxu0 %v1691
    %1723 = vmatprep.subr.bf16.mxu0 0
    %1724 = vmatpush1.bf16.msra.mxu0 %v1692
    %1725 = vmatprep.subr.bf16.mxu0 0
    %1726 = vmatpush1.bf16.msra.mxu0 %v1693
    %1727 = vmatprep.subr.bf16.mxu0 0
    %1728 = vmatpush1.bf16.msra.mxu0 %v1694
    %1729 = vmatprep.subr.bf16.mxu0 0
    %1730 = vmatpush1.bf16.msra.mxu0 %v1695
    %1731 = vmatprep.subr.bf16.mxu0 0
    %1732 = vmatpush1.bf16.msra.mxu0 %v1696
    %1733 = vmatprep.subr.bf16.mxu0 0
    %1734 = vmatpush1.bf16.msra.mxu0 %v1697
    %1735 = vmatprep.subr.bf16.mxu0 0
    %1736 = vmatpush1.bf16.msra.mxu0 %v1698
    %1737 = vmatprep.subr.bf16.mxu0 0
    %1738 = vmatpush1.bf16.msra.mxu0 %v1699
    %1739 = vmatprep.mubr.bf16.mxu0 %v273
    %1740 = vmatmul.mubr.bf16.gmra.mrb[0].mxu0 %v272
    %v1741 = vpop.f32.mrb[0].mxu0
    %v1742 = vadd.f32 %v1705, %v1741
    %v1743 = vpop.f32.mrb[0].mxu0
    %v1744 = vpop.f32.mrb[0].mxu0
    %v1745 = vadd.f32 %v1705, %v1744
    %v1746 = vpop.f32.mrb[0].mxu0
    %1747 = vmatprep.mubr.bf16.mxu0 %v275
    %1748 = vmatmul.mubr.bf16.gmra.mrb[0].mxu0 %v274
    %v1749 = vpop.f32.mrb[0].mxu0
    %v1750 = vadd.f32 %v1705, %v1749
    %v1751 = vpop.f32.mrb[0].mxu0
    %v1752 = vpop.f32.mrb[0].mxu0
    %v1753 = vadd.f32 %v1705, %v1752
    %v1754 = vpop.f32.mrb[0].mxu0
    %1755 = vmatprep.mubr.bf16.mxu0 %v277
    %1756 = vmatmul.mubr.bf16.gmra.mrb[0].mxu0 %v276
    %v1757 = vpop.f32.mrb[0].mxu0
    %v1758 = vadd.f32 %v1705, %v1757
    %v1759 = vpop.f32.mrb[0].mxu0
    %v1760 = vpop.f32.mrb[0].mxu0
    %v1761 = vadd.f32 %v1705, %v1760
    %v1762 = vpop.f32.mrb[0].mxu0
    %1763 = vmatprep.mubr.bf16.mxu0 %v279
    %1764 = vmatmul.mubr.bf16.gmra.mrb[0].mxu0 %v278
    %v1765 = vpop.f32.mrb[0].mxu0
    %v1766 = vadd.f32 %v1705, %v1765
    %v1767 = vpop.f32.mrb[0].mxu0
    %v1768 = vpop.f32.mrb[0].mxu0
    %v1769 = vadd.f32 %v1705, %v1768
    %v1770 = vpop.f32.mrb[0].mxu0
    %1771 = vmatprep.mubr.bf16.mxu0 %v281
    %1772 = vmatmul.mubr.bf16.gmra.mrb[0].mxu0 %v280
    %v1773 = vpop.f32.mrb[0].mxu0
    %v1774 = vadd.f32 %v1705, %v1773
    %v1775 = vpop.f32.mrb[0].mxu0
    %v1776 = vpop.f32.mrb[0].mxu0
    %v1777 = vadd.f32 %v1705, %v1776
    %v1778 = vpop.f32.mrb[0].mxu0
    %1779 = vmatprep.mubr.bf16.mxu0 %v283
    %1780 = vmatmul.mubr.bf16.gmra.mrb[0].mxu0 %v282
    %v1781 = vpop.f32.mrb[0].mxu0
    %v1782 = vadd.f32 %v1705, %v1781
    %v1783 = vpop.f32.mrb[0].mxu0
    %v1784 = vpop.f32.mrb[0].mxu0
    %v1785 = vadd.f32 %v1705, %v1784
    %v1786 = vpop.f32.mrb[0].mxu0
    %1787 = vmatprep.mubr.bf16.mxu0 %v285
    %1788 = vmatmul.mubr.bf16.gmra.mrb[0].mxu0 %v284
    %v1789 = vpop.f32.mrb[0].mxu0
    %v1790 = vadd.f32 %v1705, %v1789
    %v1791 = vpop.f32.mrb[0].mxu0
    %v1792 = vpop.f32.mrb[0].mxu0
    %v1793 = vadd.f32 %v1705, %v1792
    %v1794 = vpop.f32.mrb[0].mxu0
    %1795 = vmatprep.mubr.bf16.mxu0 %v287
    %1796 = vmatmul.mubr.bf16.gmra.mrb[0].mxu0 %v286
    %v1797 = vpop.f32.mrb[0].mxu0
    %v1798 = vadd.f32 %v1705, %v1797
    %v1799 = vpop.f32.mrb[0].mxu0
    %v1800 = vpop.f32.mrb[0].mxu0
    %v1801 = vadd.f32 %v1705, %v1800
    %v1802 = vpop.f32.mrb[0].mxu0
    %1803 = vmatprep.mubr.bf16.mxu0 %v289
    %1804 = vmatmul.mubr.bf16.gmra.mrb[0].mxu0 %v288
    %v1805 = vpop.f32.mrb[0].mxu0
    %v1806 = vadd.f32 %v1705, %v1805
    %v1807 = vpop.f32.mrb[0].mxu0
    %v1808 = vpop.f32.mrb[0].mxu0
    %v1809 = vadd.f32 %v1705, %v1808
    %v1810 = vpop.f32.mrb[0].mxu0
    %1811 = vmatprep.mubr.bf16.mxu0 %v291
    %1812 = vmatmul.mubr.bf16.gmra.mrb[0].mxu0 %v290
    %v1813 = vpop.f32.mrb[0].mxu0
    %v1814 = vadd.f32 %v1705, %v1813
    %v1815 = vpop.f32.mrb[0].mxu0
    %v1816 = vpop.f32.mrb[0].mxu0
    %v1817 = vadd.f32 %v1705, %v1816
    %v1818 = vpop.f32.mrb[0].mxu0
    %1819 = vmatprep.mubr.bf16.mxu0 %v293
    %1820 = vmatmul.mubr.bf16.gmra.mrb[0].mxu0 %v292
    %v1821 = vpop.f32.mrb[0].mxu0
    %v1822 = vadd.f32 %v1705, %v1821
    %v1823 = vpop.f32.mrb[0].mxu0
    %v1824 = vpop.f32.mrb[0].mxu0
    %v1825 = vadd.f32 %v1705, %v1824
    %v1826 = vpop.f32.mrb[0].mxu0
    %1827 = vmatprep.mubr.bf16.mxu0 %v295
    %1828 = vmatmul.mubr.bf16.gmra.mrb[0].mxu0 %v294
    %v1829 = vpop.f32.mrb[0].mxu0
    %v1830 = vadd.f32 %v1705, %v1829
    %v1831 = vpop.f32.mrb[0].mxu0
    %v1832 = vpop.f32.mrb[0].mxu0
    %v1833 = vadd.f32 %v1705, %v1832
    %v1834 = vpop.f32.mrb[0].mxu0
    %1835 = vmatprep.mubr.bf16.mxu0 %v297
    %1836 = vmatmul.mubr.bf16.gmra.mrb[0].mxu0 %v296
    %v1837 = vpop.f32.mrb[0].mxu0
    %v1838 = vadd.f32 %v1705, %v1837
    %v1839 = vpop.f32.mrb[0].mxu0
    %v1840 = vpop.f32.mrb[0].mxu0
    %v1841 = vadd.f32 %v1705, %v1840
    %v1842 = vpop.f32.mrb[0].mxu0
    %1843 = vmatprep.mubr.bf16.mxu0 %v299
    %1844 = vmatmul.mubr.bf16.gmra.mrb[0].mxu0 %v298
    %v1845 = vpop.f32.mrb[0].mxu0
    %v1846 = vadd.f32 %v1705, %v1845
    %v1847 = vpop.f32.mrb[0].mxu0
    %v1848 = vpop.f32.mrb[0].mxu0
    %v1849 = vadd.f32 %v1705, %v1848
    %v1850 = vpop.f32.mrb[0].mxu0
    %1851 = vmatprep.mubr.bf16.mxu0 %v301
    %1852 = vmatmul.mubr.bf16.gmra.mrb[0].mxu0 %v300
    %v1853 = vpop.f32.mrb[0].mxu0
    %v1854 = vadd.f32 %v1705, %v1853
    %v1855 = vpop.f32.mrb[0].mxu0
    %v1856 = vpop.f32.mrb[0].mxu0
    %v1857 = vadd.f32 %v1705, %v1856
    %v1858 = vpop.f32.mrb[0].mxu0
    %1859 = vmatprep.mubr.bf16.mxu0 %v303
    %1860 = vmatmul.mubr.bf16.gmra.mrb[0].mxu0 %v302
    %v1861 = vpop.f32.mrb[0].mxu0
    %v1862 = vadd.f32 %v1705, %v1861
    %v1863 = vpop.f32.mrb[0].mxu0
    %v1864 = vpop.f32.mrb[0].mxu0
    %v1865 = vadd.f32 %v1705, %v1864
    %v1866 = vpop.f32.mrb[0].mxu0
    %1867 = vdwg.mxu0
    %vm1868 = vcmp.ge.f32.partialorder %v1742, 0.0
    %vm1869 = vcmp.ge.f32.partialorder %v1745, 0.0
    %vm1870 = vcmp.ge.f32.partialorder %v1750, 0.0
    %vm1871 = vcmp.ge.f32.partialorder %v1753, 0.0
    %vm1872 = vcmp.ge.f32.partialorder %v1758, 0.0
    %vm1873 = vcmp.ge.f32.partialorder %v1761, 0.0
    %vm1874 = vcmp.ge.f32.partialorder %v1766, 0.0
    %vm1875 = vcmp.ge.f32.partialorder %v1769, 0.0
    %vm1876 = vcmp.ge.f32.partialorder %v1774, 0.0
    %vm1877 = vcmp.ge.f32.partialorder %v1777, 0.0
    %vm1878 = vcmp.ge.f32.partialorder %v1782, 0.0
    %vm1879 = vcmp.ge.f32.partialorder %v1785, 0.0
    %vm1880 = vcmp.ge.f32.partialorder %v1790, 0.0
    %vm1881 = vcmp.ge.f32.partialorder %v1793, 0.0
    %vm1882 = vcmp.ge.f32.partialorder %v1798, 0.0
    %vm1883 = vcmp.ge.f32.partialorder %v1801, 0.0
    %vm1884 = vcmp.ge.f32.partialorder %v1806, 0.0
    %vm1885 = vcmp.ge.f32.partialorder %v1809, 0.0
    %vm1886 = vcmp.ge.f32.partialorder %v1814, 0.0
    %vm1887 = vcmp.ge.f32.partialorder %v1817, 0.0
    %vm1888 = vcmp.ge.f32.partialorder %v1822, 0.0
    %vm1889 = vcmp.ge.f32.partialorder %v1825, 0.0
    %vm1890 = vcmp.ge.f32.partialorder %v1830, 0.0
    %vm1891 = vcmp.ge.f32.partialorder %v1833, 0.0
    %vm1892 = vcmp.ge.f32.partialorder %v1838, 0.0
    %vm1893 = vcmp.ge.f32.partialorder %v1841, 0.0
    %vm1894 = vcmp.ge.f32.partialorder %v1846, 0.0
    %vm1895 = vcmp.ge.f32.partialorder %v1849, 0.0
    %vm1896 = vcmp.ge.f32.partialorder %v1854, 0.0
    %vm1897 = vcmp.ge.f32.partialorder %v1857, 0.0
    %vm1898 = vcmp.ge.f32.partialorder %v1862, 0.0
    %vm1899 = vcmp.ge.f32.partialorder %v1865, 0.0
    %v1900 = vld [vmem:[%s9] sm:$0x1]
    %v1902 = vlaneseq
    %v1903 = vshrl.u32 %v1902, 7
    %v1904 = vsub.s32 0, %v1903
    %v1905 = vrot.slane %v1900, %v1904
    %v1907 = vmul.f32 %v1905, %v1742
    %v1908 = vmul.f32 %v1905, %v1745
    %v1909 = vmul.f32 %v1905, %v1750
    %v1910 = vmul.f32 %v1905, %v1753
    %v1911 = vmul.f32 %v1905, %v1758
    %v1912 = vmul.f32 %v1905, %v1761
    %v1913 = vmul.f32 %v1905, %v1766
    %v1914 = vmul.f32 %v1905, %v1769
    %v1915 = vmul.f32 %v1905, %v1774
    %v1916 = vmul.f32 %v1905, %v1777
    %v1917 = vmul.f32 %v1905, %v1782
    %v1918 = vmul.f32 %v1905, %v1785
    %v1919 = vmul.f32 %v1905, %v1790
    %v1920 = vmul.f32 %v1905, %v1793
    %v1921 = vmul.f32 %v1905, %v1798
    %v1922 = vmul.f32 %v1905, %v1801
    %v1923 = vmul.f32 %v1905, %v1806
    %v1924 = vmul.f32 %v1905, %v1809
    %v1925 = vmul.f32 %v1905, %v1814
    %v1926 = vmul.f32 %v1905, %v1817
    %v1927 = vmul.f32 %v1905, %v1822
    %v1928 = vmul.f32 %v1905, %v1825
    %v1929 = vmul.f32 %v1905, %v1830
    %v1930 = vmul.f32 %v1905, %v1833
    %v1931 = vmul.f32 %v1905, %v1838
    %v1932 = vmul.f32 %v1905, %v1841
    %v1933 = vmul.f32 %v1905, %v1846
    %v1934 = vmul.f32 %v1905, %v1849
    %v1935 = vmul.f32 %v1905, %v1854
    %v1936 = vmul.f32 %v1905, %v1857
    %v1937 = vmul.f32 %v1905, %v1862
    %v1938 = vmul.f32 %v1905, %v1865
    %v1939 = vsel %vm1868, %v1742, %v1907
    %v1940 = vsel %vm1869, %v1745, %v1908
    %v1941 = vsel %vm1870, %v1750, %v1909
    %v1942 = vsel %vm1871, %v1753, %v1910
    %v1943 = vsel %vm1872, %v1758, %v1911
    %v1944 = vsel %vm1873, %v1761, %v1912
    %v1945 = vsel %vm1874, %v1766, %v1913
    %v1946 = vsel %vm1875, %v1769, %v1914
    %v1947 = vsel %vm1876, %v1774, %v1915
    %v1948 = vsel %vm1877, %v1777, %v1916
    %v1949 = vsel %vm1878, %v1782, %v1917
    %v1950 = vsel %vm1879, %v1785, %v1918
    %v1951 = vsel %vm1880, %v1790, %v1919
    %v1952 = vsel %vm1881, %v1793, %v1920
    %v1953 = vsel %vm1882, %v1798, %v1921
    %v1954 = vsel %vm1883, %v1801, %v1922
    %v1955 = vsel %vm1884, %v1806, %v1923
    %v1956 = vsel %vm1885, %v1809, %v1924
    %v1957 = vsel %vm1886, %v1814, %v1925
    %v1958 = vsel %vm1887, %v1817, %v1926
    %v1959 = vsel %vm1888, %v1822, %v1927
    %v1960 = vsel %vm1889, %v1825, %v1928
    %v1961 = vsel %vm1890, %v1830, %v1929
    %v1962 = vsel %vm1891, %v1833, %v1930
    %v1963 = vsel %vm1892, %v1838, %v1931
    %v1964 = vsel %vm1893, %v1841, %v1932
    %v1965 = vsel %vm1894, %v1846, %v1933
    %v1966 = vsel %vm1895, %v1849, %v1934
    %v1967 = vsel %vm1896, %v1854, %v1935
    %v1968 = vsel %vm1897, %v1857, %v1936
    %v1969 = vsel %vm1898, %v1862, %v1937
    %v1970 = vsel %vm1899, %v1865, %v1938
    %1971 = vst [vmem:[#allocation11] sm:$0xff] %v1939
    %1972 = vst [vmem:[#allocation11 + $0x8] sm:$0xff] %v1940
    %1973 = vst [vmem:[#allocation11 + $0x10] sm:$0xff] %v1941
    %1974 = vst [vmem:[#allocation11 + $0x18] sm:$0xff] %v1942
    %1975 = vst [vmem:[#allocation11 + $0x20] sm:$0xff] %v1943
    %1976 = vst [vmem:[#allocation11 + $0x28] sm:$0xff] %v1944
    %1977 = vst [vmem:[#allocation11 + $0x30] sm:$0xff] %v1945
    %1978 = vst [vmem:[#allocation11 + $0x38] sm:$0xff] %v1946
    %1979 = vst [vmem:[#allocation11 + $0x40] sm:$0xff] %v1947
    %1980 = vst [vmem:[#allocation11 + $0x48] sm:$0xff] %v1948
    %1981 = vst [vmem:[#allocation11 + $0x50] sm:$0xff] %v1949
    %1982 = vst [vmem:[#allocation11 + $0x58] sm:$0xff] %v1950
    %1983 = vst [vmem:[#allocation11 + $0x60] sm:$0xff] %v1951
    %1984 = vst [vmem:[#allocation11 + $0x68] sm:$0xff] %v1952
    %1985 = vst [vmem:[#allocation11 + $0x70] sm:$0xff] %v1953
    %1986 = vst [vmem:[#allocation11 + $0x78] sm:$0xff] %v1954
    %1987 = vst [vmem:[#allocation11 + $0x80] sm:$0xff] %v1955
    %1988 = vst [vmem:[#allocation11 + $0x88] sm:$0xff] %v1956
    %1989 = vst [vmem:[#allocation11 + $0x90] sm:$0xff] %v1957
    %1990 = vst [vmem:[#allocation11 + $0x98] sm:$0xff] %v1958
    %1991 = vst [vmem:[#allocation11 + $0xa0] sm:$0xff] %v1959
    %1992 = vst [vmem:[#allocation11 + $0xa8] sm:$0xff] %v1960
    %1993 = vst [vmem:[#allocation11 + $0xb0] sm:$0xff] %v1961
    %1994 = vst [vmem:[#allocation11 + $0xb8] sm:$0xff] %v1962
    %1995 = vst [vmem:[#allocation11 + $0xc0] sm:$0xff] %v1963
    %1996 = vst [vmem:[#allocation11 + $0xc8] sm:$0xff] %v1964
    %1997 = vst [vmem:[#allocation11 + $0xd0] sm:$0xff] %v1965
    %1998 = vst [vmem:[#allocation11 + $0xd8] sm:$0xff] %v1966
    %1999 = vst [vmem:[#allocation11 + $0xe0] sm:$0xff] %v1967
    %2000 = vst [vmem:[#allocation11 + $0xe8] sm:$0xff] %v1968
    %2001 = vst [vmem:[#allocation11 + $0xf0] sm:$0xff] %v1969
    %2002 = vst [vmem:[#allocation11 + $0xf8] sm:$0xff] %v1970
    // Predicated region
    $region62: #{tpu_custom_call.1} parent=1 // pred_check
      _
    $region63: #{tpu_custom_call.1} parent=1 // pred_check_branch
      %2004 = sbr.rel (0) target = $region65
    $region64: #{tpu_custom_call.1} parent=1 // pred_region
      %s2006 = ssub.s32 4096, 4096
      %2007 = vsyncadd [#allocation4], %s2006
      %s2008 = sshll.u32 [#allocation11], 4
      %s2009 = int_to_ptr.vmem [resolvable:$true] %s2008
      %2014 = dma.vmem_to_hbm [thread:$0]  %s2009, 4096, %s10, [#allocation4], 128, 128, 8
    $region65: #{tpu_custom_call.1} parent=1 // pred_fallthru
      _
    // Predicated region
    $region66: #{tpu_custom_call.1} parent=1 // pred_check
      _
    $region67: #{tpu_custom_call.1} parent=1 // pred_check_branch
      %2016 = sbr.rel (0) target = $region69
    $region68: #{tpu_custom_call.1} parent=1 // pred_region
      %2017 = dma.done [#allocation4], 4096
    $region69: #{tpu_custom_call.1} parent=1 // pred_fallthru
      _
    %2018 = vsyncpa [#allocation3], 1
    %2019 = vsyncpa [#allocation6], 1
    %2020 = vsyncpa [#allocation9], 1
    %2021 = vsyncpa [#allocation4], 1

</llo_original>
